<compile_context>
chip_gen: v5e
topology: v5e:2x2
jax: 0.10.0
libtpu: 0.0.40
codegen_flags: <defaults>
</compile_context>

<pallas_src>
import itertools
from functools import partial

import numpy as np
import jax
import jax.numpy as jnp
from jax.experimental import pallas as pl
from jax.experimental.pallas import tpu as pltpu


# --------------------------------------------------------------------------
# Tiled matmul + bias (v 1x1 conv projection, BN folded)
# --------------------------------------------------------------------------

def _mm_bias_kernel(x_ref, w_ref, b_ref, o_ref, acc_ref):
    @pl.when(pl.program_id(2) == 0)
    def _():
        acc_ref[...] = jnp.zeros_like(acc_ref)

    acc_ref[...] += jnp.dot(x_ref[...], w_ref[...],
                            preferred_element_type=jnp.float32)

    @pl.when(pl.program_id(2) == pl.num_programs(2) - 1)
    def _():
        o_ref[...] = (acc_ref[...] + b_ref[...].astype(jnp.float32)
                      ).astype(o_ref.dtype)


def _pick_tile(size, target, align):
    """Largest `align`-multiple tile <= target that divides `size` (else full dim)."""
    if size <= target:
        return size
    t = (target // align) * align
    while t >= align:
        if size % t == 0:
            return t
        t -= align
    return size


def linear(x2, w, b, *, tm=256, tn=256, tk=512):
    """(M, K) @ (K, D) + b -> (M, D), tiled & software-pipelined on the MXU."""
    M, K = x2.shape
    D = w.shape[1]
    tm = _pick_tile(M, tm, 8)
    tn = _pick_tile(D, tn, 128)
    tk = _pick_tile(K, tk, 128)
    grid = (M // tm, D // tn, K // tk)
    return pl.pallas_call(
        _mm_bias_kernel,
        grid=grid,
        in_specs=[pl.BlockSpec((tm, tk), lambda i, j, k: (i, k)),
                  pl.BlockSpec((tk, tn), lambda i, j, k: (k, j)),
                  pl.BlockSpec((1, tn), lambda i, j, k: (0, j))],
        out_specs=pl.BlockSpec((tm, tn), lambda i, j, k: (i, j)),
        out_shape=jax.ShapeDtypeStruct((M, D), x2.dtype),
        scratch_shapes=[pltpu.VMEM((tm, tn), jnp.float32)],
        compiler_params=pltpu.CompilerParams(
            dimension_semantics=("parallel", "parallel", "arbitrary")),
    )(x2, w, b.reshape(1, D))


# --------------------------------------------------------------------------
# Depthwise 3x3 conv (v_local), BN folded into weight/bias
# --------------------------------------------------------------------------

def _dwconv_kernel(xp_ref, w_ref, b_ref, o_ref, *, H, W, ksz):
    xp = xp_ref[0].astype(jnp.float32)       # (H+ksz-1, W+ksz-1, Ch)
    wf = w_ref[...].astype(jnp.float32)      # (ksz*ksz, Ch)
    Ch = xp.shape[-1]
    acc = jnp.zeros((H, W, Ch), jnp.float32)
    for i in range(ksz):                     # static unroll over the 9 taps
        for j in range(ksz):
            acc = acc + xp[i:i + H, j:j + W, :] * wf[i * ksz + j]
    acc = acc + b_ref[...].astype(jnp.float32)
    o_ref[0] = acc.astype(o_ref.dtype)


def depthwise_conv3x3(x_nhwc, w, b):
    """Depthwise conv, groups == channels, SAME padding.  x:(B,H,W,Ch), w:(Ch,k,k)."""
    B, H, W, Ch = x_nhwc.shape
    ksz = w.shape[-1]
    pad = ksz // 2
    xp = jnp.pad(x_nhwc, ((0, 0), (pad, pad), (pad, pad), (0, 0)))
    wf = jnp.transpose(w, (1, 2, 0)).reshape(ksz * ksz, Ch)
    Hp, Wp = H + 2 * pad, W + 2 * pad
    return pl.pallas_call(
        partial(_dwconv_kernel, H=H, W=W, ksz=ksz),
        grid=(B,),
        in_specs=[pl.BlockSpec((1, Hp, Wp, Ch), lambda bb: (bb, 0, 0, 0)),
                  pl.BlockSpec((ksz * ksz, Ch), lambda bb: (0, 0)),
                  pl.BlockSpec((1, Ch), lambda bb: (0, 0))],
        out_specs=pl.BlockSpec((1, H, W, Ch), lambda bb: (bb, 0, 0, 0)),
        out_shape=jax.ShapeDtypeStruct((B, H, W, Ch), x_nhwc.dtype),
        compiler_params=pltpu.CompilerParams(dimension_semantics=("parallel",)),
    )(xp, wf, b.reshape(1, Ch))


# --------------------------------------------------------------------------
# Fused attention: q/k projection -> QK^T + bias -> talking_head1 -> softmax
#                  -> talking_head2 -> attn@V -> +v_local -> ReLU -> proj
# --------------------------------------------------------------------------

def _attn_kernel(x_ref, v_ref, vl_ref, ab_ref, qkw_ref, qkb_ref,
                 w1_ref, b1_ref, w2_ref, b2_ref, pw_ref, pb_ref, o_ref,
                 *, heads, key_dim, d):
    N = x_ref.shape[1]
    dim_out = pw_ref.shape[2]
    nh_kd = heads * key_dim

    x = x_ref[0].astype(jnp.float32)                                   # (N, dim)
    # q/k projections (scale already folded into the q half of the weights)
    qk = jnp.dot(x, qkw_ref[...].astype(jnp.float32),
                 preferred_element_type=jnp.float32) + qkb_ref[...].astype(jnp.float32)
    v_all = v_ref[0].astype(jnp.float32)                               # (N, dh)
    vl_all = vl_ref[0].astype(jnp.float32)                             # (N, dh)

    # per-head attention scores: q @ k^T (+ scale folded) + attention_bias
    scores = []
    for h in range(heads):
        qh = qk[:, h * key_dim:(h + 1) * key_dim]                      # (N, kd)
        kh = qk[:, nh_kd + h * key_dim: nh_kd + (h + 1) * key_dim]     # (N, kd)
        s = jax.lax.dot_general(qh, kh, (((1,), (1,)), ((), ())),
                                preferred_element_type=jnp.float32)
        scores.append(s + ab_ref[h].astype(jnp.float32))

    # talking-head 1: 1x1 conv over the head axis (tiny contraction -> SMEM + VPU)
    mixed = []
    for o in range(heads):
        acc = jnp.full((N, N), b1_ref[o], jnp.float32)
        for h in range(heads):
            acc = acc + w1_ref[o, h] * scores[h]
        mixed.append(acc)

    # softmax over the last axis (EUP approx reciprocal for the normalization)
    probs = []
    for h in range(heads):
        s = mixed[h]
        s = s - jnp.max(s, axis=-1, keepdims=True)
        p = jnp.exp(s)
        denom = jnp.sum(p, axis=-1, keepdims=True)
        probs.append(p * pl.reciprocal(denom, approx=True))

    # talking-head 2, attn @ v, + v_local, ReLU, and the folded projection
    out = jnp.zeros((N, dim_out), jnp.float32) + pb_ref[...].astype(jnp.float32)
    for o in range(heads):
        p = jnp.full((N, N), b2_ref[o], jnp.float32)
        for h in range(heads):
            p = p + w2_ref[o, h] * probs[h]
        vo = v_all[:, o * d:(o + 1) * d]                               # (N, d)
        xo = jnp.dot(p, vo, preferred_element_type=jnp.float32)
        xo = jnp.maximum(xo + vl_all[:, o * d:(o + 1) * d], 0.0)
        out = out + jnp.dot(xo, pw_ref[o].astype(jnp.float32),
                            preferred_element_type=jnp.float32)
    o_ref[0] = out.astype(o_ref.dtype)


def fused_attention(x, v, v_local, ab, qk_w, qk_b, th1_w, th1_b, th2_w, th2_b,
                    proj_w3, proj_b, *, num_heads, key_dim, d):
    B, N, dim = x.shape
    dh = num_heads * d
    nh_kd = num_heads * key_dim
    smem = pl.BlockSpec(memory_space=pltpu.MemorySpace.SMEM)
    return pl.pallas_call(
        partial(_attn_kernel, heads=num_heads, key_dim=key_dim, d=d),
        grid=(B,),
        in_specs=[pl.BlockSpec((1, N, dim), lambda b: (b, 0, 0)),
                  pl.BlockSpec((1, N, dh), lambda b: (b, 0, 0)),
                  pl.BlockSpec((1, N, dh), lambda b: (b, 0, 0)),
                  pl.BlockSpec((num_heads, N, N), lambda b: (0, 0, 0)),
                  pl.BlockSpec((dim, 2 * nh_kd), lambda b: (0, 0)),
                  pl.BlockSpec((1, 2 * nh_kd), lambda b: (0, 0)),
                  smem, smem, smem, smem,
                  pl.BlockSpec((num_heads, d, dim), lambda b: (0, 0, 0)),
                  pl.BlockSpec((1, dim), lambda b: (0, 0))],
        out_specs=pl.BlockSpec((1, N, dim), lambda b: (b, 0, 0)),
        out_shape=jax.ShapeDtypeStruct((B, N, dim), x.dtype),
        compiler_params=pltpu.CompilerParams(dimension_semantics=("parallel",)),
    )(x, v, v_local, ab, qk_w, qk_b.reshape(1, 2 * nh_kd),
      th1_w, th1_b, th2_w, th2_b, proj_w3, proj_b.reshape(1, dim))


# --------------------------------------------------------------------------
# Forward pass (stride=None path of Attention4D)
# --------------------------------------------------------------------------

def attention4d_forward(x_nchw, params, *, num_heads, key_dim, attn_ratio,
                        resolution):
    # TODO(synk): the stride_conv / bilinear-upsample path (stride != None) is
    # not implemented; the module's default stride=None path is covered.
    B, dim, H, W = x_nchw.shape
    assert H == resolution and W == resolution
    nh_kd = key_dim * num_heads
    d = attn_ratio * key_dim
    dh = d * num_heads
    N = H * W
    scale = key_dim ** (-0.5)

    x2 = jnp.transpose(x_nchw, (0, 2, 3, 1)).reshape(B * N, dim)      # NHWC, flattened

    qkv_w, qkv_b = params["qkv_w"], params["qkv_b"]
    # q/k weights: fold the attention scale into the q half (exact:  (q@k)*s == (s*q)@k)
    qk_w = jnp.concatenate([qkv_w[:, :nh_kd] * scale,
                            qkv_w[:, nh_kd:2 * nh_kd]], axis=1)        # (dim, 2*nh_kd)
    qk_b = jnp.concatenate([qkv_b[:nh_kd] * scale,
                            qkv_b[nh_kd:2 * nh_kd]], axis=0)           # (2*nh_kd,)
    v_w = qkv_w[:, 2 * nh_kd:]
    v_b = qkv_b[2 * nh_kd:]

    # v 1x1 conv (+BN folded) as a tiled matmul; q/k are computed inside the
    # fused attention kernel, so they never touch HBM.
    v = linear(x2, v_w, v_b)                                           # (B*N, dh)

    # v_local = BN(DWConv3x3(v)), channels-last.
    v_local = depthwise_conv3x3(v.reshape(B, H, W, dh),
                                params["vlocal_w"], params["vlocal_b"])

    # relative-position attention bias table -> (heads, N, N)
    ab = params["attention_biases"][:, params["attention_bias_idxs"]]

    proj_w3 = params["proj_w"].reshape(num_heads, d, dim)              # head-major split

    out = fused_attention(x2.reshape(B, N, dim), v.reshape(B, N, dh),
                          v_local.reshape(B, N, dh), ab, qk_w, qk_b,
                          params["th1_w"], params["th1_b"],
                          params["th2_w"], params["th2_b"],
                          proj_w3, params["proj_b"],
                          num_heads=num_heads, key_dim=key_dim, d=d)   # (B, N, dim)

    return jnp.transpose(out.reshape(B, H, W, dim), (0, 3, 1, 2))      # NCHW like PyTorch


# --------------------------------------------------------------------------
# Pure-JAX reference (same folded-BN semantics) for a correctness self-check
# --------------------------------------------------------------------------

def attention4d_reference(x_nchw, params, *, num_heads, key_dim, attn_ratio,
                          resolution):
    B, dim, H, W = x_nchw.shape
    nh_kd = key_dim * num_heads
    d = attn_ratio * key_dim
    dh = d * num_heads
    N = H * W
    scale = key_dim ** (-0.5)

    x = jnp.transpose(x_nchw, (0, 2, 3, 1)).reshape(B, N, dim)
    qkv = x @ params["qkv_w"] + params["qkv_b"]
    q = qkv[..., :nh_kd].reshape(B, N, num_heads, key_dim).transpose(0, 2, 1, 3)
    k = qkv[..., nh_kd:2 * nh_kd].reshape(B, N, num_heads, key_dim).transpose(0, 2, 1, 3)
    vf = qkv[..., 2 * nh_kd:]
    v = vf.reshape(B, N, num_heads, d).transpose(0, 2, 1, 3)

    vp = jnp.pad(vf.reshape(B, H, W, dh), ((0, 0), (1, 1), (1, 1), (0, 0)))
    wt = jnp.transpose(params["vlocal_w"], (1, 2, 0))                   # (3,3,dh)
    vl = sum(vp[:, i:i + H, j:j + W, :] * wt[i, j]
             for i in range(3) for j in range(3)) + params["vlocal_b"]
    vl = vl.reshape(B, N, num_heads, d).transpose(0, 2, 1, 3)

    ab = params["attention_biases"][:, params["attention_bias_idxs"]]
    attn = jnp.einsum('bhnk,bhmk->bhnm', q, k) * scale + ab[None]
    attn = jnp.einsum('oh,bhnm->bonm', params["th1_w"], attn) \
        + params["th1_b"][None, :, None, None]
    attn = jax.nn.softmax(attn, axis=-1)
    attn = jnp.einsum('oh,bhnm->bonm', params["th2_w"], attn) \
        + params["th2_b"][None, :, None, None]
    xo = jnp.einsum('bhnm,bhmd->bhnd', attn, v)
    xo = jnp.maximum(xo + vl, 0.0)
    out = xo.transpose(0, 2, 1, 3).reshape(B, N, dh) @ params["proj_w"] \
        + params["proj_b"]
    return jnp.transpose(out.reshape(B, H, W, dim), (0, 3, 1, 2))


# --------------------------------------------------------------------------
# Parameters (BatchNorms folded into the preceding convs, eval-mode semantics)
# --------------------------------------------------------------------------

def init_params(key, *, dim, key_dim, num_heads, attn_ratio, resolution):
    nh_kd = key_dim * num_heads
    d = attn_ratio * key_dim
    dh = d * num_heads
    h = 2 * nh_kd + dh
    N = resolution * resolution
    keys = jax.random.split(key, 11)

    def rn(k, shape, fan_in):
        return jax.random.normal(k, shape, jnp.float32) / jnp.sqrt(float(fan_in))

    # relative-position index table (same construction as the PyTorch module)
    points = list(itertools.product(range(resolution), range(resolution)))
    offsets, idxs = {}, []
    for p1 in points:
        for p2 in points:
            off = (abs(p1[0] - p2[0]), abs(p1[1] - p2[1]))
            if off not in offsets:
                offsets[off] = len(offsets)
            idxs.append(offsets[off])
    idxs = jnp.asarray(np.array(idxs, dtype=np.int32).reshape(N, N))

    return {
        "qkv_w": rn(keys[0], (dim, h), dim),                     # stored as W^T (in, out)
        "qkv_b": 0.02 * jax.random.normal(keys[1], (h,), jnp.float32),
        "vlocal_w": rn(keys[2], (dh, 3, 3), 9),                  # depthwise (Ch, k, k)
        "vlocal_b": 0.02 * jax.random.normal(keys[3], (dh,), jnp.float32),
        "th1_w": rn(keys[4], (num_heads, num_heads), num_heads),
        "th1_b": 0.02 * jax.random.normal(keys[5], (num_heads,), jnp.float32),
        "th2_w": rn(keys[6], (num_heads, num_heads), num_heads),
        "th2_b": 0.02 * jax.random.normal(keys[7], (num_heads,), jnp.float32),
        "proj_w": rn(keys[8], (dh, dim), dh),                    # ReLU->1x1 conv->BN folded
        "proj_b": 0.02 * jax.random.normal(keys[9], (dim,), jnp.float32),
        "attention_biases": 0.02 * jax.random.normal(
            keys[10], (num_heads, len(offsets)), jnp.float32),
        "attention_bias_idxs": idxs,
    }


# --------------------------------------------------------------------------

if __name__ == "__main__":
    # Small shapes consistent with the module: dim=32, key_dim=8, heads=4,
    # attn_ratio=2, resolution=4 -> N=16, d=16, dh=64.  Input is NCHW.
    dim, key_dim, num_heads, attn_ratio, resolution = 32, 8, 4, 2, 4
    B = 2
    key = jax.random.PRNGKey(0)
    kx, kp = jax.random.split(key)
    x = jax.random.normal(kx, (B, dim, resolution, resolution), jnp.float32)
    params = init_params(kp, dim=dim, key_dim=key_dim, num_heads=num_heads,
                         attn_ratio=attn_ratio, resolution=resolution)

    fwd = jax.jit(partial(attention4d_forward, num_heads=num_heads,
                          key_dim=key_dim, attn_ratio=attn_ratio,
                          resolution=resolution))
    out = fwd(x, params)
    jax.block_until_ready(out)
    assert out.shape == (B, dim, resolution, resolution)
    assert out.dtype == jnp.float32

    ref = attention4d_reference(x, params, num_heads=num_heads, key_dim=key_dim,
                                attn_ratio=attn_ratio, resolution=resolution)
    err = float(jnp.max(jnp.abs(out - ref)))
    assert err < 1e-2, f"max abs error vs reference: {err}"
    print("KERNEL_OK")
</pallas_src>

<mosaic_0001>
module attributes {stable_mosaic.version = 11 : i64} {
  func.func @_mm_bias_kernel(%arg0: i32, %arg1: i32, %arg2: i32, %arg3: memref<32x32xf32, #tpu.memory_space<vmem>>, %arg4: memref<32x64xf32, #tpu.memory_space<vmem>>, %arg5: memref<1x64xf32, #tpu.memory_space<vmem>>, %arg6: memref<32x64xf32, #tpu.memory_space<vmem>>, %arg7: memref<32x64xf32, #tpu.memory_space<vmem>>) attributes {dimension_semantics = [#tpu.dimension_semantics<parallel>, #tpu.dimension_semantics<parallel>, #tpu.dimension_semantics<arbitrary>], iteration_bounds = array<i64: 1, 1, 1>, scalar_prefetch = 0 : i64, scratch_operands = 1 : i64, tpu.core_type = #tpu.core_type<tc>, window_params = [{transform_indices = @transform_0, window_bounds = array<i64: 32, 32>}, {transform_indices = @transform_1, window_bounds = array<i64: 32, 64>}, {transform_indices = @transform_2, window_bounds = array<i64: 1, 64>}, {transform_indices = @transform_3, window_bounds = array<i64: 32, 64>}]} {
    %c0_i32 = arith.constant 0 : i32
    %0 = arith.cmpi eq, %arg2, %c0_i32 : i32
    %1 = arith.extui %0 : i1 to i32
    %c0_i32_0 = arith.constant 0 : i32
    %2 = arith.cmpi ne, %1, %c0_i32_0 : i32
    scf.if %2 {
      %cst_10 = arith.constant 0.000000e+00 : f32
      %12 = vector.broadcast %cst_10 : f32 to vector<32x64xf32>
      %c0_11 = arith.constant 0 : index
      %c0_12 = arith.constant 0 : index
      %13 = vector.load %arg7[%c0_11, %c0_12] : memref<32x64xf32, #tpu.memory_space<vmem>>, vector<32x64xf32>
      tpu.vector_store %arg7[%c0_11, %c0_12], %12 {strides = array<i32>} : memref<32x64xf32, #tpu.memory_space<vmem>>, vector<32x64xf32>,
    } else {
    }
    %c0 = arith.constant 0 : index
    %c0_1 = arith.constant 0 : index
    %3 = vector.load %arg7[%c0, %c0_1] : memref<32x64xf32, #tpu.memory_space<vmem>>, vector<32x64xf32>
    %c0_2 = arith.constant 0 : index
    %c0_3 = arith.constant 0 : index
    %4 = vector.load %arg3[%c0_2, %c0_3] : memref<32x32xf32, #tpu.memory_space<vmem>>, vector<32x32xf32>
    %c0_4 = arith.constant 0 : index
    %c0_5 = arith.constant 0 : index
    %5 = vector.load %arg4[%c0_4, %c0_5] : memref<32x64xf32, #tpu.memory_space<vmem>>, vector<32x64xf32>
    %cst = arith.constant dense<0.000000e+00> : vector<32x64xf32>
    %6 = tpu.matmul %4, %5, %cst {dimension_numbers = #tpu.dot_dimension_numbers<[1], [0], [0], [1], [0, 0, 1, 1], [], []>} : vector<32x32xf32>, vector<32x64xf32>, vector<32x64xf32> -> vector<32x64xf32>
    %7 = arith.addf %3, %6 : vector<32x64xf32>
    %c0_6 = arith.constant 0 : index
    %c0_7 = arith.constant 0 : index
    %8 = vector.load %arg7[%c0_6, %c0_7] : memref<32x64xf32, #tpu.memory_space<vmem>>, vector<32x64xf32>
    tpu.vector_store %arg7[%c0_6, %c0_7], %7 {strides = array<i32>} : memref<32x64xf32, #tpu.memory_space<vmem>>, vector<32x64xf32>,
    %c0_i32_8 = arith.constant 0 : i32
    %9 = arith.cmpi eq, %arg2, %c0_i32_8 : i32
    %10 = arith.extui %9 : i1 to i32
    %c0_i32_9 = arith.constant 0 : i32
    %11 = arith.cmpi ne, %10, %c0_i32_9 : i32
    scf.if %11 {
      %c0_10 = arith.constant 0 : index
      %c0_11 = arith.constant 0 : index
      %12 = vector.load %arg7[%c0_10, %c0_11] : memref<32x64xf32, #tpu.memory_space<vmem>>, vector<32x64xf32>
      %c0_12 = arith.constant 0 : index
      %c0_13 = arith.constant 0 : index
      %13 = vector.load %arg5[%c0_12, %c0_13] : memref<1x64xf32, #tpu.memory_space<vmem>>, vector<1x64xf32>
      %14 = vector.broadcast %13 : vector<1x64xf32> to vector<32x64xf32>
      %15 = arith.addf %12, %14 : vector<32x64xf32>
      %c0_14 = arith.constant 0 : index
      %c0_15 = arith.constant 0 : index
      %16 = vector.load %arg6[%c0_14, %c0_15] : memref<32x64xf32, #tpu.memory_space<vmem>>, vector<32x64xf32>
      tpu.vector_store %arg6[%c0_14, %c0_15], %15 {strides = array<i32>} : memref<32x64xf32, #tpu.memory_space<vmem>>, vector<32x64xf32>,
    } else {
    }
    return
  }
  func.func @transform_0(%arg0: i32, %arg1: i32, %arg2: i32) -> (i32, i32) {
    %c0_i32 = arith.constant 0 : i32
    return %arg0, %arg2 : i32, i32
  }
  func.func @transform_1(%arg0: i32, %arg1: i32, %arg2: i32) -> (i32, i32) {
    %c0_i32 = arith.constant 0 : i32
    return %arg2, %arg1 : i32, i32
  }
  func.func @transform_2(%arg0: i32, %arg1: i32, %arg2: i32) -> (i32, i32) {
    %c0_i32 = arith.constant 0 : i32
    %c0_i32_0 = arith.constant 0 : i32
    return %c0_i32, %arg1 : i32, i32
  }
  func.func @transform_3(%arg0: i32, %arg1: i32, %arg2: i32) -> (i32, i32) {
    %c0_i32 = arith.constant 0 : i32
    return %arg0, %arg1 : i32, i32
  }
}

module attributes {stable_mosaic.version = 11 : i64} {
  func.func @_dwconv_kernel(%arg0: i32, %arg1: memref<1x6x6x64xf32, #tpu.memory_space<vmem>>, %arg2: memref<9x64xf32, #tpu.memory_space<vmem>>, %arg3: memref<1x64xf32, #tpu.memory_space<vmem>>, %arg4: memref<1x4x4x64xf32, #tpu.memory_space<vmem>>) attributes {dimension_semantics = [#tpu.dimension_semantics<parallel>], iteration_bounds = array<i64: 2>, scalar_prefetch = 0 : i64, scratch_operands = 0 : i64, tpu.core_type = #tpu.core_type<tc>, window_params = [{transform_indices = @transform_0, window_bounds = array<i64: 1, 6, 6, 64>}, {pipeline_mode = #tpu.pipeline_mode<synchronous>, transform_indices = @transform_1, window_bounds = array<i64: 9, 64>}, {pipeline_mode = #tpu.pipeline_mode<synchronous>, transform_indices = @transform_2, window_bounds = array<i64: 1, 64>}, {transform_indices = @transform_3, window_bounds = array<i64: 1, 4, 4, 64>}]} {
    %c0 = arith.constant 0 : index
    %c0_0 = arith.constant 0 : index
    %c0_1 = arith.constant 0 : index
    %c0_2 = arith.constant 0 : index
    %0 = vector.load %arg1[%c0, %c0_0, %c0_1, %c0_2] : memref<1x6x6x64xf32, #tpu.memory_space<vmem>>, vector<1x6x6x64xf32>
    %1 = vector.shape_cast %0 : vector<1x6x6x64xf32> to vector<6x6x64xf32>
    %c0_3 = arith.constant 0 : index
    %c0_4 = arith.constant 0 : index
    %2 = vector.load %arg2[%c0_3, %c0_4] : memref<9x64xf32, #tpu.memory_space<vmem>>, vector<9x64xf32>
    %cst = arith.constant 0.000000e+00 : f32
    %3 = vector.broadcast %cst : f32 to vector<4x4x64xf32>
    %4 = vector.extract_strided_slice %1 {offsets = [0, 0, 0], sizes = [4, 4, 64], strides = [1, 1, 1]} : vector<6x6x64xf32> to vector<4x4x64xf32>
    %5 = vector.extract_strided_slice %2 {offsets = [0, 0], sizes = [1, 64], strides = [1, 1]} : vector<9x64xf32> to vector<1x64xf32>
    %6 = vector.shape_cast %5 : vector<1x64xf32> to vector<64xf32>
    %7 = vector.shape_cast %6 : vector<64xf32> to vector<1x1x64xf32>
    %8 = vector.broadcast %7 : vector<1x1x64xf32> to vector<4x4x64xf32>
    %9 = arith.mulf %4, %8 : vector<4x4x64xf32>
    %10 = arith.addf %3, %9 : vector<4x4x64xf32>
    %11 = vector.extract_strided_slice %1 {offsets = [0, 1, 0], sizes = [4, 4, 64], strides = [1, 1, 1]} : vector<6x6x64xf32> to vector<4x4x64xf32>
    %12 = vector.extract_strided_slice %2 {offsets = [1, 0], sizes = [1, 64], strides = [1, 1]} : vector<9x64xf32> to vector<1x64xf32>
    %13 = vector.shape_cast %12 : vector<1x64xf32> to vector<64xf32>
    %14 = vector.shape_cast %13 : vector<64xf32> to vector<1x1x64xf32>
    %15 = vector.broadcast %14 : vector<1x1x64xf32> to vector<4x4x64xf32>
    %16 = arith.mulf %11, %15 : vector<4x4x64xf32>
    %17 = arith.addf %10, %16 : vector<4x4x64xf32>
    %18 = vector.extract_strided_slice %1 {offsets = [0, 2, 0], sizes = [4, 4, 64], strides = [1, 1, 1]} : vector<6x6x64xf32> to vector<4x4x64xf32>
    %19 = vector.extract_strided_slice %2 {offsets = [2, 0], sizes = [1, 64], strides = [1, 1]} : vector<9x64xf32> to vector<1x64xf32>
    %20 = vector.shape_cast %19 : vector<1x64xf32> to vector<64xf32>
    %21 = vector.shape_cast %20 : vector<64xf32> to vector<1x1x64xf32>
    %22 = vector.broadcast %21 : vector<1x1x64xf32> to vector<4x4x64xf32>
    %23 = arith.mulf %18, %22 : vector<4x4x64xf32>
    %24 = arith.addf %17, %23 : vector<4x4x64xf32>
    %25 = vector.extract_strided_slice %1 {offsets = [1, 0, 0], sizes = [4, 4, 64], strides = [1, 1, 1]} : vector<6x6x64xf32> to vector<4x4x64xf32>
    %26 = vector.extract_strided_slice %2 {offsets = [3, 0], sizes = [1, 64], strides = [1, 1]} : vector<9x64xf32> to vector<1x64xf32>
    %27 = vector.shape_cast %26 : vector<1x64xf32> to vector<64xf32>
    %28 = vector.shape_cast %27 : vector<64xf32> to vector<1x1x64xf32>
    %29 = vector.broadcast %28 : vector<1x1x64xf32> to vector<4x4x64xf32>
    %30 = arith.mulf %25, %29 : vector<4x4x64xf32>
    %31 = arith.addf %24, %30 : vector<4x4x64xf32>
    %32 = vector.extract_strided_slice %1 {offsets = [1, 1, 0], sizes = [4, 4, 64], strides = [1, 1, 1]} : vector<6x6x64xf32> to vector<4x4x64xf32>
    %33 = vector.extract_strided_slice %2 {offsets = [4, 0], sizes = [1, 64], strides = [1, 1]} : vector<9x64xf32> to vector<1x64xf32>
    %34 = vector.shape_cast %33 : vector<1x64xf32> to vector<64xf32>
    %35 = vector.shape_cast %34 : vector<64xf32> to vector<1x1x64xf32>
    %36 = vector.broadcast %35 : vector<1x1x64xf32> to vector<4x4x64xf32>
    %37 = arith.mulf %32, %36 : vector<4x4x64xf32>
    %38 = arith.addf %31, %37 : vector<4x4x64xf32>
    %39 = vector.extract_strided_slice %1 {offsets = [1, 2, 0], sizes = [4, 4, 64], strides = [1, 1, 1]} : vector<6x6x64xf32> to vector<4x4x64xf32>
    %40 = vector.extract_strided_slice %2 {offsets = [5, 0], sizes = [1, 64], strides = [1, 1]} : vector<9x64xf32> to vector<1x64xf32>
    %41 = vector.shape_cast %40 : vector<1x64xf32> to vector<64xf32>
    %42 = vector.shape_cast %41 : vector<64xf32> to vector<1x1x64xf32>
    %43 = vector.broadcast %42 : vector<1x1x64xf32> to vector<4x4x64xf32>
    %44 = arith.mulf %39, %43 : vector<4x4x64xf32>
    %45 = arith.addf %38, %44 : vector<4x4x64xf32>
    %46 = vector.extract_strided_slice %1 {offsets = [2, 0, 0], sizes = [4, 4, 64], strides = [1, 1, 1]} : vector<6x6x64xf32> to vector<4x4x64xf32>
    %47 = vector.extract_strided_slice %2 {offsets = [6, 0], sizes = [1, 64], strides = [1, 1]} : vector<9x64xf32> to vector<1x64xf32>
    %48 = vector.shape_cast %47 : vector<1x64xf32> to vector<64xf32>
    %49 = vector.shape_cast %48 : vector<64xf32> to vector<1x1x64xf32>
    %50 = vector.broadcast %49 : vector<1x1x64xf32> to vector<4x4x64xf32>
    %51 = arith.mulf %46, %50 : vector<4x4x64xf32>
    %52 = arith.addf %45, %51 : vector<4x4x64xf32>
    %53 = vector.extract_strided_slice %1 {offsets = [2, 1, 0], sizes = [4, 4, 64], strides = [1, 1, 1]} : vector<6x6x64xf32> to vector<4x4x64xf32>
    %54 = vector.extract_strided_slice %2 {offsets = [7, 0], sizes = [1, 64], strides = [1, 1]} : vector<9x64xf32> to vector<1x64xf32>
    %55 = vector.shape_cast %54 : vector<1x64xf32> to vector<64xf32>
    %56 = vector.shape_cast %55 : vector<64xf32> to vector<1x1x64xf32>
    %57 = vector.broadcast %56 : vector<1x1x64xf32> to vector<4x4x64xf32>
    %58 = arith.mulf %53, %57 : vector<4x4x64xf32>
    %59 = arith.addf %52, %58 : vector<4x4x64xf32>
    %60 = vector.extract_strided_slice %1 {offsets = [2, 2, 0], sizes = [4, 4, 64], strides = [1, 1, 1]} : vector<6x6x64xf32> to vector<4x4x64xf32>
    %61 = vector.extract_strided_slice %2 {offsets = [8, 0], sizes = [1, 64], strides = [1, 1]} : vector<9x64xf32> to vector<1x64xf32>
    %62 = vector.shape_cast %61 : vector<1x64xf32> to vector<64xf32>
    %63 = vector.shape_cast %62 : vector<64xf32> to vector<1x1x64xf32>
    %64 = vector.broadcast %63 : vector<1x1x64xf32> to vector<4x4x64xf32>
    %65 = arith.mulf %60, %64 : vector<4x4x64xf32>
    %66 = arith.addf %59, %65 : vector<4x4x64xf32>
    %c0_5 = arith.constant 0 : index
    %c0_6 = arith.constant 0 : index
    %67 = vector.load %arg3[%c0_5, %c0_6] : memref<1x64xf32, #tpu.memory_space<vmem>>, vector<1x64xf32>
    %68 = vector.shape_cast %67 : vector<1x64xf32> to vector<1x1x64xf32>
    %69 = vector.broadcast %68 : vector<1x1x64xf32> to vector<4x4x64xf32>
    %70 = arith.addf %66, %69 : vector<4x4x64xf32>
    %c0_7 = arith.constant 0 : index
    %c0_8 = arith.constant 0 : index
    %c0_9 = arith.constant 0 : index
    %c0_10 = arith.constant 0 : index
    %71 = vector.load %arg4[%c0_7, %c0_8, %c0_9, %c0_10] : memref<1x4x4x64xf32, #tpu.memory_space<vmem>>, vector<1x4x4x64xf32>
    %72 = vector.shape_cast %71 : vector<1x4x4x64xf32> to vector<4x4x64xf32>
    %73 = vector.shape_cast %70 : vector<4x4x64xf32> to vector<1x4x4x64xf32>
    tpu.vector_store %arg4[%c0_7, %c0_8, %c0_9, %c0_10], %73 {strides = array<i32>} : memref<1x4x4x64xf32, #tpu.memory_space<vmem>>, vector<1x4x4x64xf32>,
    return
  }
  func.func @transform_0(%arg0: i32) -> (i32, i32, i32, i32) {
    %c0_i32 = arith.constant 0 : i32
    %c0_i32_0 = arith.constant 0 : i32
    %c0_i32_1 = arith.constant 0 : i32
    %c0_i32_2 = arith.constant 0 : i32
    return %arg0, %c0_i32, %c0_i32_0, %c0_i32_1 : i32, i32, i32, i32
  }
  func.func @transform_1(%arg0: i32) -> (i32, i32) {
    %c0_i32 = arith.constant 0 : i32
    %c0_i32_0 = arith.constant 0 : i32
    %c0_i32_1 = arith.constant 0 : i32
    return %c0_i32, %c0_i32_0 : i32, i32
  }
  func.func @transform_2(%arg0: i32) -> (i32, i32) {
    %c0_i32 = arith.constant 0 : i32
    %c0_i32_0 = arith.constant 0 : i32
    %c0_i32_1 = arith.constant 0 : i32
    return %c0_i32, %c0_i32_0 : i32, i32
  }
  func.func @transform_3(%arg0: i32) -> (i32, i32, i32, i32) {
    %c0_i32 = arith.constant 0 : i32
    %c0_i32_0 = arith.constant 0 : i32
    %c0_i32_1 = arith.constant 0 : i32
    %c0_i32_2 = arith.constant 0 : i32
    return %arg0, %c0_i32, %c0_i32_0, %c0_i32_1 : i32, i32, i32, i32
  }
}

module attributes {stable_mosaic.version = 11 : i64} {
  func.func @_attn_kernel(%arg0: i32, %arg1: memref<1x16x32xf32, #tpu.memory_space<vmem>>, %arg2: memref<1x16x64xf32, #tpu.memory_space<vmem>>, %arg3: memref<1x16x64xf32, #tpu.memory_space<vmem>>, %arg4: memref<4x16x16xf32, #tpu.memory_space<vmem>>, %arg5: memref<32x64xf32, #tpu.memory_space<vmem>>, %arg6: memref<1x64xf32, #tpu.memory_space<vmem>>, %arg7: memref<4x4xf32, #tpu.memory_space<smem>>, %arg8: memref<4xf32, #tpu.memory_space<smem>>, %arg9: memref<4x4xf32, #tpu.memory_space<smem>>, %arg10: memref<4xf32, #tpu.memory_space<smem>>, %arg11: memref<4x16x32xf32, #tpu.memory_space<vmem>>, %arg12: memref<1x32xf32, #tpu.memory_space<vmem>>, %arg13: memref<1x16x32xf32, #tpu.memory_space<vmem>>) attributes {dimension_semantics = [#tpu.dimension_semantics<parallel>], iteration_bounds = array<i64: 2>, scalar_prefetch = 0 : i64, scratch_operands = 0 : i64, tpu.core_type = #tpu.core_type<tc>, window_params = [{transform_indices = @transform_0, window_bounds = array<i64: 1, 16, 32>}, {transform_indices = @transform_1, window_bounds = array<i64: 1, 16, 64>}, {transform_indices = @transform_2, window_bounds = array<i64: 1, 16, 64>}, {pipeline_mode = #tpu.pipeline_mode<synchronous>, transform_indices = @transform_3, window_bounds = array<i64: 4, 16, 16>}, {pipeline_mode = #tpu.pipeline_mode<synchronous>, transform_indices = @transform_4, window_bounds = array<i64: 32, 64>}, {pipeline_mode = #tpu.pipeline_mode<synchronous>, transform_indices = @transform_5, window_bounds = array<i64: 1, 64>}, {transform_indices = @transform_6, window_bounds = array<i64: 4, 4>}, {transform_indices = @transform_7, window_bounds = array<i64: 4>}, {transform_indices = @transform_8, window_bounds = array<i64: 4, 4>}, {transform_indices = @transform_9, window_bounds = array<i64: 4>}, {pipeline_mode = #tpu.pipeline_mode<synchronous>, transform_indices = @transform_10, window_bounds = array<i64: 4, 16, 32>}, {pipeline_mode = #tpu.pipeline_mode<synchronous>, transform_indices = @transform_11, window_bounds = array<i64: 1, 32>}, {transform_indices = @transform_12, window_bounds = array<i64: 1, 16, 32>}]} {
    %c0 = arith.constant 0 : index
    %c0_0 = arith.constant 0 : index
    %c0_1 = arith.constant 0 : index
    %0 = vector.load %arg1[%c0, %c0_0, %c0_1] : memref<1x16x32xf32, #tpu.memory_space<vmem>>, vector<1x16x32xf32>
    %1 = vector.shape_cast %0 : vector<1x16x32xf32> to vector<16x32xf32>
    %c0_2 = arith.constant 0 : index
    %c0_3 = arith.constant 0 : index
    %2 = vector.load %arg5[%c0_2, %c0_3] : memref<32x64xf32, #tpu.memory_space<vmem>>, vector<32x64xf32>
    %cst = arith.constant dense<0.000000e+00> : vector<16x64xf32>
    %3 = tpu.matmul %1, %2, %cst {dimension_numbers = #tpu.dot_dimension_numbers<[1], [0], [0], [1], [0, 0, 1, 1], [], []>} : vector<16x32xf32>, vector<32x64xf32>, vector<16x64xf32> -> vector<16x64xf32>
    %c0_4 = arith.constant 0 : index
    %c0_5 = arith.constant 0 : index
    %4 = vector.load %arg6[%c0_4, %c0_5] : memref<1x64xf32, #tpu.memory_space<vmem>>, vector<1x64xf32>
    %5 = vector.broadcast %4 : vector<1x64xf32> to vector<16x64xf32>
    %6 = arith.addf %3, %5 : vector<16x64xf32>
    %c0_6 = arith.constant 0 : index
    %c0_7 = arith.constant 0 : index
    %c0_8 = arith.constant 0 : index
    %7 = vector.load %arg2[%c0_6, %c0_7, %c0_8] : memref<1x16x64xf32, #tpu.memory_space<vmem>>, vector<1x16x64xf32>
    %8 = vector.shape_cast %7 : vector<1x16x64xf32> to vector<16x64xf32>
    %c0_9 = arith.constant 0 : index
    %c0_10 = arith.constant 0 : index
    %c0_11 = arith.constant 0 : index
    %9 = vector.load %arg3[%c0_9, %c0_10, %c0_11] : memref<1x16x64xf32, #tpu.memory_space<vmem>>, vector<1x16x64xf32>
    %10 = vector.shape_cast %9 : vector<1x16x64xf32> to vector<16x64xf32>
    %11 = vector.extract_strided_slice %6 {offsets = [0, 0], sizes = [16, 8], strides = [1, 1]} : vector<16x64xf32> to vector<16x8xf32>
    %12 = vector.extract_strided_slice %6 {offsets = [0, 32], sizes = [16, 8], strides = [1, 1]} : vector<16x64xf32> to vector<16x8xf32>
    %cst_12 = arith.constant dense<0.000000e+00> : vector<16x16xf32>
    %13 = tpu.matmul %11, %12, %cst_12 {dimension_numbers = #tpu.dot_dimension_numbers<[1], [1], [0], [0], [0, 0, 1, 0], [], []>} : vector<16x8xf32>, vector<16x8xf32>, vector<16x16xf32> -> vector<16x16xf32>
    %c0_13 = arith.constant 0 : index
    %c0_14 = arith.constant 0 : index
    %c0_15 = arith.constant 0 : index
    %14 = vector.load %arg4[%c0_13, %c0_14, %c0_15] : memref<4x16x16xf32, #tpu.memory_space<vmem>>, vector<1x16x16xf32>
    %15 = vector.shape_cast %14 : vector<1x16x16xf32> to vector<16x16xf32>
    %16 = arith.addf %13, %15 : vector<16x16xf32>
    %17 = vector.extract_strided_slice %6 {offsets = [0, 8], sizes = [16, 8], strides = [1, 1]} : vector<16x64xf32> to vector<16x8xf32>
    %18 = vector.extract_strided_slice %6 {offsets = [0, 40], sizes = [16, 8], strides = [1, 1]} : vector<16x64xf32> to vector<16x8xf32>
    %cst_16 = arith.constant dense<0.000000e+00> : vector<16x16xf32>
    %19 = tpu.matmul %17, %18, %cst_16 {dimension_numbers = #tpu.dot_dimension_numbers<[1], [1], [0], [0], [0, 0, 1, 0], [], []>} : vector<16x8xf32>, vector<16x8xf32>, vector<16x16xf32> -> vector<16x16xf32>
    %c1 = arith.constant 1 : index
    %c0_17 = arith.constant 0 : index
    %c0_18 = arith.constant 0 : index
    %20 = vector.load %arg4[%c1, %c0_17, %c0_18] : memref<4x16x16xf32, #tpu.memory_space<vmem>>, vector<1x16x16xf32>
    %21 = vector.shape_cast %20 : vector<1x16x16xf32> to vector<16x16xf32>
    %22 = arith.addf %19, %21 : vector<16x16xf32>
    %23 = vector.extract_strided_slice %6 {offsets = [0, 16], sizes = [16, 8], strides = [1, 1]} : vector<16x64xf32> to vector<16x8xf32>
    %24 = vector.extract_strided_slice %6 {offsets = [0, 48], sizes = [16, 8], strides = [1, 1]} : vector<16x64xf32> to vector<16x8xf32>
    %cst_19 = arith.constant dense<0.000000e+00> : vector<16x16xf32>
    %25 = tpu.matmul %23, %24, %cst_19 {dimension_numbers = #tpu.dot_dimension_numbers<[1], [1], [0], [0], [0, 0, 1, 0], [], []>} : vector<16x8xf32>, vector<16x8xf32>, vector<16x16xf32> -> vector<16x16xf32>
    %c2 = arith.constant 2 : index
    %c0_20 = arith.constant 0 : index
    %c0_21 = arith.constant 0 : index
    %26 = vector.load %arg4[%c2, %c0_20, %c0_21] : memref<4x16x16xf32, #tpu.memory_space<vmem>>, vector<1x16x16xf32>
    %27 = vector.shape_cast %26 : vector<1x16x16xf32> to vector<16x16xf32>
    %28 = arith.addf %25, %27 : vector<16x16xf32>
    %29 = vector.extract_strided_slice %6 {offsets = [0, 24], sizes = [16, 8], strides = [1, 1]} : vector<16x64xf32> to vector<16x8xf32>
    %30 = vector.extract_strided_slice %6 {offsets = [0, 56], sizes = [16, 8], strides = [1, 1]} : vector<16x64xf32> to vector<16x8xf32>
    %cst_22 = arith.constant dense<0.000000e+00> : vector<16x16xf32>
    %31 = tpu.matmul %29, %30, %cst_22 {dimension_numbers = #tpu.dot_dimension_numbers<[1], [1], [0], [0], [0, 0, 1, 0], [], []>} : vector<16x8xf32>, vector<16x8xf32>, vector<16x16xf32> -> vector<16x16xf32>
    %c3 = arith.constant 3 : index
    %c0_23 = arith.constant 0 : index
    %c0_24 = arith.constant 0 : index
    %32 = vector.load %arg4[%c3, %c0_23, %c0_24] : memref<4x16x16xf32, #tpu.memory_space<vmem>>, vector<1x16x16xf32>
    %33 = vector.shape_cast %32 : vector<1x16x16xf32> to vector<16x16xf32>
    %34 = arith.addf %31, %33 : vector<16x16xf32>
    %c0_25 = arith.constant 0 : index
    %35 = memref.load %arg8[%c0_25] : memref<4xf32, #tpu.memory_space<smem>>
    %36 = vector.broadcast %35 : f32 to vector<16x16xf32>
    %c0_26 = arith.constant 0 : index
    %c0_27 = arith.constant 0 : index
    %37 = memref.load %arg7[%c0_26, %c0_27] : memref<4x4xf32, #tpu.memory_space<smem>>
    %38 = vector.broadcast %37 : f32 to vector<16x16xf32>
    %39 = arith.mulf %38, %16 : vector<16x16xf32>
    %40 = arith.addf %36, %39 : vector<16x16xf32>
    %c0_28 = arith.constant 0 : index
    %c1_29 = arith.constant 1 : index
    %41 = memref.load %arg7[%c0_28, %c1_29] : memref<4x4xf32, #tpu.memory_space<smem>>
    %42 = vector.broadcast %41 : f32 to vector<16x16xf32>
    %43 = arith.mulf %42, %22 : vector<16x16xf32>
    %44 = arith.addf %40, %43 : vector<16x16xf32>
    %c0_30 = arith.constant 0 : index
    %c2_31 = arith.constant 2 : index
    %45 = memref.load %arg7[%c0_30, %c2_31] : memref<4x4xf32, #tpu.memory_space<smem>>
    %46 = vector.broadcast %45 : f32 to vector<16x16xf32>
    %47 = arith.mulf %46, %28 : vector<16x16xf32>
    %48 = arith.addf %44, %47 : vector<16x16xf32>
    %c0_32 = arith.constant 0 : index
    %c3_33 = arith.constant 3 : index
    %49 = memref.load %arg7[%c0_32, %c3_33] : memref<4x4xf32, #tpu.memory_space<smem>>
    %50 = vector.broadcast %49 : f32 to vector<16x16xf32>
    %51 = arith.mulf %50, %34 : vector<16x16xf32>
    %52 = arith.addf %48, %51 : vector<16x16xf32>
    %c1_34 = arith.constant 1 : index
    %53 = memref.load %arg8[%c1_34] : memref<4xf32, #tpu.memory_space<smem>>
    %54 = vector.broadcast %53 : f32 to vector<16x16xf32>
    %c1_35 = arith.constant 1 : index
    %c0_36 = arith.constant 0 : index
    %55 = memref.load %arg7[%c1_35, %c0_36] : memref<4x4xf32, #tpu.memory_space<smem>>
    %56 = vector.broadcast %55 : f32 to vector<16x16xf32>
    %57 = arith.mulf %56, %16 : vector<16x16xf32>
    %58 = arith.addf %54, %57 : vector<16x16xf32>
    %c1_37 = arith.constant 1 : index
    %c1_38 = arith.constant 1 : index
    %59 = memref.load %arg7[%c1_37, %c1_38] : memref<4x4xf32, #tpu.memory_space<smem>>
    %60 = vector.broadcast %59 : f32 to vector<16x16xf32>
    %61 = arith.mulf %60, %22 : vector<16x16xf32>
    %62 = arith.addf %58, %61 : vector<16x16xf32>
    %c1_39 = arith.constant 1 : index
    %c2_40 = arith.constant 2 : index
    %63 = memref.load %arg7[%c1_39, %c2_40] : memref<4x4xf32, #tpu.memory_space<smem>>
    %64 = vector.broadcast %63 : f32 to vector<16x16xf32>
    %65 = arith.mulf %64, %28 : vector<16x16xf32>
    %66 = arith.addf %62, %65 : vector<16x16xf32>
    %c1_41 = arith.constant 1 : index
    %c3_42 = arith.constant 3 : index
    %67 = memref.load %arg7[%c1_41, %c3_42] : memref<4x4xf32, #tpu.memory_space<smem>>
    %68 = vector.broadcast %67 : f32 to vector<16x16xf32>
    %69 = arith.mulf %68, %34 : vector<16x16xf32>
    %70 = arith.addf %66, %69 : vector<16x16xf32>
    %c2_43 = arith.constant 2 : index
    %71 = memref.load %arg8[%c2_43] : memref<4xf32, #tpu.memory_space<smem>>
    %72 = vector.broadcast %71 : f32 to vector<16x16xf32>
    %c2_44 = arith.constant 2 : index
    %c0_45 = arith.constant 0 : index
    %73 = memref.load %arg7[%c2_44, %c0_45] : memref<4x4xf32, #tpu.memory_space<smem>>
    %74 = vector.broadcast %73 : f32 to vector<16x16xf32>
    %75 = arith.mulf %74, %16 : vector<16x16xf32>
    %76 = arith.addf %72, %75 : vector<16x16xf32>
    %c2_46 = arith.constant 2 : index
    %c1_47 = arith.constant 1 : index
    %77 = memref.load %arg7[%c2_46, %c1_47] : memref<4x4xf32, #tpu.memory_space<smem>>
    %78 = vector.broadcast %77 : f32 to vector<16x16xf32>
    %79 = arith.mulf %78, %22 : vector<16x16xf32>
    %80 = arith.addf %76, %79 : vector<16x16xf32>
    %c2_48 = arith.constant 2 : index
    %c2_49 = arith.constant 2 : index
    %81 = memref.load %arg7[%c2_48, %c2_49] : memref<4x4xf32, #tpu.memory_space<smem>>
    %82 = vector.broadcast %81 : f32 to vector<16x16xf32>
    %83 = arith.mulf %82, %28 : vector<16x16xf32>
    %84 = arith.addf %80, %83 : vector<16x16xf32>
    %c2_50 = arith.constant 2 : index
    %c3_51 = arith.constant 3 : index
    %85 = memref.load %arg7[%c2_50, %c3_51] : memref<4x4xf32, #tpu.memory_space<smem>>
    %86 = vector.broadcast %85 : f32 to vector<16x16xf32>
    %87 = arith.mulf %86, %34 : vector<16x16xf32>
    %88 = arith.addf %84, %87 : vector<16x16xf32>
    %c3_52 = arith.constant 3 : index
    %89 = memref.load %arg8[%c3_52] : memref<4xf32, #tpu.memory_space<smem>>
    %90 = vector.broadcast %89 : f32 to vector<16x16xf32>
    %c3_53 = arith.constant 3 : index
    %c0_54 = arith.constant 0 : index
    %91 = memref.load %arg7[%c3_53, %c0_54] : memref<4x4xf32, #tpu.memory_space<smem>>
    %92 = vector.broadcast %91 : f32 to vector<16x16xf32>
    %93 = arith.mulf %92, %16 : vector<16x16xf32>
    %94 = arith.addf %90, %93 : vector<16x16xf32>
    %c3_55 = arith.constant 3 : index
    %c1_56 = arith.constant 1 : index
    %95 = memref.load %arg7[%c3_55, %c1_56] : memref<4x4xf32, #tpu.memory_space<smem>>
    %96 = vector.broadcast %95 : f32 to vector<16x16xf32>
    %97 = arith.mulf %96, %22 : vector<16x16xf32>
    %98 = arith.addf %94, %97 : vector<16x16xf32>
    %c3_57 = arith.constant 3 : index
    %c2_58 = arith.constant 2 : index
    %99 = memref.load %arg7[%c3_57, %c2_58] : memref<4x4xf32, #tpu.memory_space<smem>>
    %100 = vector.broadcast %99 : f32 to vector<16x16xf32>
    %101 = arith.mulf %100, %28 : vector<16x16xf32>
    %102 = arith.addf %98, %101 : vector<16x16xf32>
    %c3_59 = arith.constant 3 : index
    %c3_60 = arith.constant 3 : index
    %103 = memref.load %arg7[%c3_59, %c3_60] : memref<4x4xf32, #tpu.memory_space<smem>>
    %104 = vector.broadcast %103 : f32 to vector<16x16xf32>
    %105 = arith.mulf %104, %34 : vector<16x16xf32>
    %106 = arith.addf %102, %105 : vector<16x16xf32>
    %cst_61 = arith.constant dense<0xFF800000> : vector<16xf32>
    %107 = vector.multi_reduction <maximumf>, %52, %cst_61 [1] : vector<16x16xf32> to vector<16xf32>
    %108 = vector.shape_cast %107 : vector<16xf32> to vector<16x1xf32>
    %109 = vector.broadcast %108 : vector<16x1xf32> to vector<16x16xf32>
    %110 = arith.subf %52, %109 : vector<16x16xf32>
    %111 = math.exp %110 : vector<16x16xf32>
    %cst_62 = arith.constant dense<0.000000e+00> : vector<16xf32>
    %112 = vector.multi_reduction <add>, %111, %cst_62 [1] : vector<16x16xf32> to vector<16xf32>
    %113 = vector.shape_cast %112 : vector<16xf32> to vector<16x1xf32>
    %114 = tpu.reciprocal %113 {approx = true} : vector<16x1xf32> -> vector<16x1xf32>
    %115 = vector.broadcast %114 : vector<16x1xf32> to vector<16x16xf32>
    %116 = arith.mulf %111, %115 : vector<16x16xf32>
    %cst_63 = arith.constant dense<0xFF800000> : vector<16xf32>
    %117 = vector.multi_reduction <maximumf>, %70, %cst_63 [1] : vector<16x16xf32> to vector<16xf32>
    %118 = vector.shape_cast %117 : vector<16xf32> to vector<16x1xf32>
    %119 = vector.broadcast %118 : vector<16x1xf32> to vector<16x16xf32>
    %120 = arith.subf %70, %119 : vector<16x16xf32>
    %121 = math.exp %120 : vector<16x16xf32>
    %cst_64 = arith.constant dense<0.000000e+00> : vector<16xf32>
    %122 = vector.multi_reduction <add>, %121, %cst_64 [1] : vector<16x16xf32> to vector<16xf32>
    %123 = vector.shape_cast %122 : vector<16xf32> to vector<16x1xf32>
    %124 = tpu.reciprocal %123 {approx = true} : vector<16x1xf32> -> vector<16x1xf32>
    %125 = vector.broadcast %124 : vector<16x1xf32> to vector<16x16xf32>
    %126 = arith.mulf %121, %125 : vector<16x16xf32>
    %cst_65 = arith.constant dense<0xFF800000> : vector<16xf32>
    %127 = vector.multi_reduction <maximumf>, %88, %cst_65 [1] : vector<16x16xf32> to vector<16xf32>
    %128 = vector.shape_cast %127 : vector<16xf32> to vector<16x1xf32>
    %129 = vector.broadcast %128 : vector<16x1xf32> to vector<16x16xf32>
    %130 = arith.subf %88, %129 : vector<16x16xf32>
    %131 = math.exp %130 : vector<16x16xf32>
    %cst_66 = arith.constant dense<0.000000e+00> : vector<16xf32>
    %132 = vector.multi_reduction <add>, %131, %cst_66 [1] : vector<16x16xf32> to vector<16xf32>
    %133 = vector.shape_cast %132 : vector<16xf32> to vector<16x1xf32>
    %134 = tpu.reciprocal %133 {approx = true} : vector<16x1xf32> -> vector<16x1xf32>
    %135 = vector.broadcast %134 : vector<16x1xf32> to vector<16x16xf32>
    %136 = arith.mulf %131, %135 : vector<16x16xf32>
    %cst_67 = arith.constant dense<0xFF800000> : vector<16xf32>
    %137 = vector.multi_reduction <maximumf>, %106, %cst_67 [1] : vector<16x16xf32> to vector<16xf32>
    %138 = vector.shape_cast %137 : vector<16xf32> to vector<16x1xf32>
    %139 = vector.broadcast %138 : vector<16x1xf32> to vector<16x16xf32>
    %140 = arith.subf %106, %139 : vector<16x16xf32>
    %141 = math.exp %140 : vector<16x16xf32>
    %cst_68 = arith.constant dense<0.000000e+00> : vector<16xf32>
    %142 = vector.multi_reduction <add>, %141, %cst_68 [1] : vector<16x16xf32> to vector<16xf32>
    %143 = vector.shape_cast %142 : vector<16xf32> to vector<16x1xf32>
    %144 = tpu.reciprocal %143 {approx = true} : vector<16x1xf32> -> vector<16x1xf32>
    %145 = vector.broadcast %144 : vector<16x1xf32> to vector<16x16xf32>
    %146 = arith.mulf %141, %145 : vector<16x16xf32>
    %cst_69 = arith.constant 0.000000e+00 : f32
    %147 = vector.broadcast %cst_69 : f32 to vector<16x32xf32>
    %c0_70 = arith.constant 0 : index
    %c0_71 = arith.constant 0 : index
    %148 = vector.load %arg12[%c0_70, %c0_71] : memref<1x32xf32, #tpu.memory_space<vmem>>, vector<1x32xf32>
    %149 = vector.broadcast %148 : vector<1x32xf32> to vector<16x32xf32>
    %150 = arith.addf %147, %149 : vector<16x32xf32>
    %c0_72 = arith.constant 0 : index
    %151 = memref.load %arg10[%c0_72] : memref<4xf32, #tpu.memory_space<smem>>
    %152 = vector.broadcast %151 : f32 to vector<16x16xf32>
    %c0_73 = arith.constant 0 : index
    %c0_74 = arith.constant 0 : index
    %153 = memref.load %arg9[%c0_73, %c0_74] : memref<4x4xf32, #tpu.memory_space<smem>>
    %154 = vector.broadcast %153 : f32 to vector<16x16xf32>
    %155 = arith.mulf %154, %116 : vector<16x16xf32>
    %156 = arith.addf %152, %155 : vector<16x16xf32>
    %c0_75 = arith.constant 0 : index
    %c1_76 = arith.constant 1 : index
    %157 = memref.load %arg9[%c0_75, %c1_76] : memref<4x4xf32, #tpu.memory_space<smem>>
    %158 = vector.broadcast %157 : f32 to vector<16x16xf32>
    %159 = arith.mulf %158, %126 : vector<16x16xf32>
    %160 = arith.addf %156, %159 : vector<16x16xf32>
    %c0_77 = arith.constant 0 : index
    %c2_78 = arith.constant 2 : index
    %161 = memref.load %arg9[%c0_77, %c2_78] : memref<4x4xf32, #tpu.memory_space<smem>>
    %162 = vector.broadcast %161 : f32 to vector<16x16xf32>
    %163 = arith.mulf %162, %136 : vector<16x16xf32>
    %164 = arith.addf %160, %163 : vector<16x16xf32>
    %c0_79 = arith.constant 0 : index
    %c3_80 = arith.constant 3 : index
    %165 = memref.load %arg9[%c0_79, %c3_80] : memref<4x4xf32, #tpu.memory_space<smem>>
    %166 = vector.broadcast %165 : f32 to vector<16x16xf32>
    %167 = arith.mulf %166, %146 : vector<16x16xf32>
    %168 = arith.addf %164, %167 : vector<16x16xf32>
    %169 = vector.extract_strided_slice %8 {offsets = [0, 0], sizes = [16, 16], strides = [1, 1]} : vector<16x64xf32> to vector<16x16xf32>
    %cst_81 = arith.constant dense<0.000000e+00> : vector<16x16xf32>
    %170 = tpu.matmul %168, %169, %cst_81 {dimension_numbers = #tpu.dot_dimension_numbers<[1], [0], [0], [1], [0, 0, 1, 1], [], []>} : vector<16x16xf32>, vector<16x16xf32>, vector<16x16xf32> -> vector<16x16xf32>
    %171 = vector.extract_strided_slice %10 {offsets = [0, 0], sizes = [16, 16], strides = [1, 1]} : vector<16x64xf32> to vector<16x16xf32>
    %172 = arith.addf %170, %171 : vector<16x16xf32>
    %cst_82 = arith.constant 0.000000e+00 : f32
    %173 = vector.broadcast %cst_82 : f32 to vector<16x16xf32>
    %174 = arith.maximumf %172, %173 : vector<16x16xf32>
    %c0_83 = arith.constant 0 : index
    %c0_84 = arith.constant 0 : index
    %c0_85 = arith.constant 0 : index
    %175 = vector.load %arg11[%c0_83, %c0_84, %c0_85] : memref<4x16x32xf32, #tpu.memory_space<vmem>>, vector<1x16x32xf32>
    %176 = vector.shape_cast %175 : vector<1x16x32xf32> to vector<16x32xf32>
    %cst_86 = arith.constant dense<0.000000e+00> : vector<16x32xf32>
    %177 = tpu.matmul %174, %176, %cst_86 {dimension_numbers = #tpu.dot_dimension_numbers<[1], [0], [0], [1], [0, 0, 1, 1], [], []>} : vector<16x16xf32>, vector<16x32xf32>, vector<16x32xf32> -> vector<16x32xf32>
    %178 = arith.addf %150, %177 : vector<16x32xf32>
    %c1_87 = arith.constant 1 : index
    %179 = memref.load %arg10[%c1_87] : memref<4xf32, #tpu.memory_space<smem>>
    %180 = vector.broadcast %179 : f32 to vector<16x16xf32>
    %c1_88 = arith.constant 1 : index
    %c0_89 = arith.constant 0 : index
    %181 = memref.load %arg9[%c1_88, %c0_89] : memref<4x4xf32, #tpu.memory_space<smem>>
    %182 = vector.broadcast %181 : f32 to vector<16x16xf32>
    %183 = arith.mulf %182, %116 : vector<16x16xf32>
    %184 = arith.addf %180, %183 : vector<16x16xf32>
    %c1_90 = arith.constant 1 : index
    %c1_91 = arith.constant 1 : index
    %185 = memref.load %arg9[%c1_90, %c1_91] : memref<4x4xf32, #tpu.memory_space<smem>>
    %186 = vector.broadcast %185 : f32 to vector<16x16xf32>
    %187 = arith.mulf %186, %126 : vector<16x16xf32>
    %188 = arith.addf %184, %187 : vector<16x16xf32>
    %c1_92 = arith.constant 1 : index
    %c2_93 = arith.constant 2 : index
    %189 = memref.load %arg9[%c1_92, %c2_93] : memref<4x4xf32, #tpu.memory_space<smem>>
    %190 = vector.broadcast %189 : f32 to vector<16x16xf32>
    %191 = arith.mulf %190, %136 : vector<16x16xf32>
    %192 = arith.addf %188, %191 : vector<16x16xf32>
    %c1_94 = arith.constant 1 : index
    %c3_95 = arith.constant 3 : index
    %193 = memref.load %arg9[%c1_94, %c3_95] : memref<4x4xf32, #tpu.memory_space<smem>>
    %194 = vector.broadcast %193 : f32 to vector<16x16xf32>
    %195 = arith.mulf %194, %146 : vector<16x16xf32>
    %196 = arith.addf %192, %195 : vector<16x16xf32>
    %197 = vector.extract_strided_slice %8 {offsets = [0, 16], sizes = [16, 16], strides = [1, 1]} : vector<16x64xf32> to vector<16x16xf32>
    %cst_96 = arith.constant dense<0.000000e+00> : vector<16x16xf32>
    %198 = tpu.matmul %196, %197, %cst_96 {dimension_numbers = #tpu.dot_dimension_numbers<[1], [0], [0], [1], [0, 0, 1, 1], [], []>} : vector<16x16xf32>, vector<16x16xf32>, vector<16x16xf32> -> vector<16x16xf32>
    %199 = vector.extract_strided_slice %10 {offsets = [0, 16], sizes = [16, 16], strides = [1, 1]} : vector<16x64xf32> to vector<16x16xf32>
    %200 = arith.addf %198, %199 : vector<16x16xf32>
    %cst_97 = arith.constant 0.000000e+00 : f32
    %201 = vector.broadcast %cst_97 : f32 to vector<16x16xf32>
    %202 = arith.maximumf %200, %201 : vector<16x16xf32>
    %c1_98 = arith.constant 1 : index
    %c0_99 = arith.constant 0 : index
    %c0_100 = arith.constant 0 : index
    %203 = vector.load %arg11[%c1_98, %c0_99, %c0_100] : memref<4x16x32xf32, #tpu.memory_space<vmem>>, vector<1x16x32xf32>
    %204 = vector.shape_cast %203 : vector<1x16x32xf32> to vector<16x32xf32>
    %cst_101 = arith.constant dense<0.000000e+00> : vector<16x32xf32>
    %205 = tpu.matmul %202, %204, %cst_101 {dimension_numbers = #tpu.dot_dimension_numbers<[1], [0], [0], [1], [0, 0, 1, 1], [], []>} : vector<16x16xf32>, vector<16x32xf32>, vector<16x32xf32> -> vector<16x32xf32>
    %206 = arith.addf %178, %205 : vector<16x32xf32>
    %c2_102 = arith.constant 2 : index
    %207 = memref.load %arg10[%c2_102] : memref<4xf32, #tpu.memory_space<smem>>
    %208 = vector.broadcast %207 : f32 to vector<16x16xf32>
    %c2_103 = arith.constant 2 : index
    %c0_104 = arith.constant 0 : index
    %209 = memref.load %arg9[%c2_103, %c0_104] : memref<4x4xf32, #tpu.memory_space<smem>>
    %210 = vector.broadcast %209 : f32 to vector<16x16xf32>
    %211 = arith.mulf %210, %116 : vector<16x16xf32>
    %212 = arith.addf %208, %211 : vector<16x16xf32>
    %c2_105 = arith.constant 2 : index
    %c1_106 = arith.constant 1 : index
    %213 = memref.load %arg9[%c2_105, %c1_106] : memref<4x4xf32, #tpu.memory_space<smem>>
    %214 = vector.broadcast %213 : f32 to vector<16x16xf32>
    %215 = arith.mulf %214, %126 : vector<16x16xf32>
    %216 = arith.addf %212, %215 : vector<16x16xf32>
    %c2_107 = arith.constant 2 : index
    %c2_108 = arith.constant 2 : index
    %217 = memref.load %arg9[%c2_107, %c2_108] : memref<4x4xf32, #tpu.memory_space<smem>>
    %218 = vector.broadcast %217 : f32 to vector<16x16xf32>
    %219 = arith.mulf %218, %136 : vector<16x16xf32>
    %220 = arith.addf %216, %219 : vector<16x16xf32>
    %c2_109 = arith.constant 2 : index
    %c3_110 = arith.constant 3 : index
    %221 = memref.load %arg9[%c2_109, %c3_110] : memref<4x4xf32, #tpu.memory_space<smem>>
    %222 = vector.broadcast %221 : f32 to vector<16x16xf32>
    %223 = arith.mulf %222, %146 : vector<16x16xf32>
    %224 = arith.addf %220, %223 : vector<16x16xf32>
    %225 = vector.extract_strided_slice %8 {offsets = [0, 32], sizes = [16, 16], strides = [1, 1]} : vector<16x64xf32> to vector<16x16xf32>
    %cst_111 = arith.constant dense<0.000000e+00> : vector<16x16xf32>
    %226 = tpu.matmul %224, %225, %cst_111 {dimension_numbers = #tpu.dot_dimension_numbers<[1], [0], [0], [1], [0, 0, 1, 1], [], []>} : vector<16x16xf32>, vector<16x16xf32>, vector<16x16xf32> -> vector<16x16xf32>
    %227 = vector.extract_strided_slice %10 {offsets = [0, 32], sizes = [16, 16], strides = [1, 1]} : vector<16x64xf32> to vector<16x16xf32>
    %228 = arith.addf %226, %227 : vector<16x16xf32>
    %cst_112 = arith.constant 0.000000e+00 : f32
    %229 = vector.broadcast %cst_112 : f32 to vector<16x16xf32>
    %230 = arith.maximumf %228, %229 : vector<16x16xf32>
    %c2_113 = arith.constant 2 : index
    %c0_114 = arith.constant 0 : index
    %c0_115 = arith.constant 0 : index
    %231 = vector.load %arg11[%c2_113, %c0_114, %c0_115] : memref<4x16x32xf32, #tpu.memory_space<vmem>>, vector<1x16x32xf32>
    %232 = vector.shape_cast %231 : vector<1x16x32xf32> to vector<16x32xf32>
    %cst_116 = arith.constant dense<0.000000e+00> : vector<16x32xf32>
    %233 = tpu.matmul %230, %232, %cst_116 {dimension_numbers = #tpu.dot_dimension_numbers<[1], [0], [0], [1], [0, 0, 1, 1], [], []>} : vector<16x16xf32>, vector<16x32xf32>, vector<16x32xf32> -> vector<16x32xf32>
    %234 = arith.addf %206, %233 : vector<16x32xf32>
    %c3_117 = arith.constant 3 : index
    %235 = memref.load %arg10[%c3_117] : memref<4xf32, #tpu.memory_space<smem>>
    %236 = vector.broadcast %235 : f32 to vector<16x16xf32>
    %c3_118 = arith.constant 3 : index
    %c0_119 = arith.constant 0 : index
    %237 = memref.load %arg9[%c3_118, %c0_119] : memref<4x4xf32, #tpu.memory_space<smem>>
    %238 = vector.broadcast %237 : f32 to vector<16x16xf32>
    %239 = arith.mulf %238, %116 : vector<16x16xf32>
    %240 = arith.addf %236, %239 : vector<16x16xf32>
    %c3_120 = arith.constant 3 : index
    %c1_121 = arith.constant 1 : index
    %241 = memref.load %arg9[%c3_120, %c1_121] : memref<4x4xf32, #tpu.memory_space<smem>>
    %242 = vector.broadcast %241 : f32 to vector<16x16xf32>
    %243 = arith.mulf %242, %126 : vector<16x16xf32>
    %244 = arith.addf %240, %243 : vector<16x16xf32>
    %c3_122 = arith.constant 3 : index
    %c2_123 = arith.constant 2 : index
    %245 = memref.load %arg9[%c3_122, %c2_123] : memref<4x4xf32, #tpu.memory_space<smem>>
    %246 = vector.broadcast %245 : f32 to vector<16x16xf32>
    %247 = arith.mulf %246, %136 : vector<16x16xf32>
    %248 = arith.addf %244, %247 : vector<16x16xf32>
    %c3_124 = arith.constant 3 : index
    %c3_125 = arith.constant 3 : index
    %249 = memref.load %arg9[%c3_124, %c3_125] : memref<4x4xf32, #tpu.memory_space<smem>>
    %250 = vector.broadcast %249 : f32 to vector<16x16xf32>
    %251 = arith.mulf %250, %146 : vector<16x16xf32>
    %252 = arith.addf %248, %251 : vector<16x16xf32>
    %253 = vector.extract_strided_slice %8 {offsets = [0, 48], sizes = [16, 16], strides = [1, 1]} : vector<16x64xf32> to vector<16x16xf32>
    %cst_126 = arith.constant dense<0.000000e+00> : vector<16x16xf32>
    %254 = tpu.matmul %252, %253, %cst_126 {dimension_numbers = #tpu.dot_dimension_numbers<[1], [0], [0], [1], [0, 0, 1, 1], [], []>} : vector<16x16xf32>, vector<16x16xf32>, vector<16x16xf32> -> vector<16x16xf32>
    %255 = vector.extract_strided_slice %10 {offsets = [0, 48], sizes = [16, 16], strides = [1, 1]} : vector<16x64xf32> to vector<16x16xf32>
    %256 = arith.addf %254, %255 : vector<16x16xf32>
    %cst_127 = arith.constant 0.000000e+00 : f32
    %257 = vector.broadcast %cst_127 : f32 to vector<16x16xf32>
    %258 = arith.maximumf %256, %257 : vector<16x16xf32>
    %c3_128 = arith.constant 3 : index
    %c0_129 = arith.constant 0 : index
    %c0_130 = arith.constant 0 : index
    %259 = vector.load %arg11[%c3_128, %c0_129, %c0_130] : memref<4x16x32xf32, #tpu.memory_space<vmem>>, vector<1x16x32xf32>
    %260 = vector.shape_cast %259 : vector<1x16x32xf32> to vector<16x32xf32>
    %cst_131 = arith.constant dense<0.000000e+00> : vector<16x32xf32>
    %261 = tpu.matmul %258, %260, %cst_131 {dimension_numbers = #tpu.dot_dimension_numbers<[1], [0], [0], [1], [0, 0, 1, 1], [], []>} : vector<16x16xf32>, vector<16x32xf32>, vector<16x32xf32> -> vector<16x32xf32>
    %262 = arith.addf %234, %261 : vector<16x32xf32>
    %c0_132 = arith.constant 0 : index
    %c0_133 = arith.constant 0 : index
    %c0_134 = arith.constant 0 : index
    %263 = vector.load %arg13[%c0_132, %c0_133, %c0_134] : memref<1x16x32xf32, #tpu.memory_space<vmem>>, vector<1x16x32xf32>
    %264 = vector.shape_cast %263 : vector<1x16x32xf32> to vector<16x32xf32>
    %265 = vector.shape_cast %262 : vector<16x32xf32> to vector<1x16x32xf32>
    tpu.vector_store %arg13[%c0_132, %c0_133, %c0_134], %265 {strides = array<i32>} : memref<1x16x32xf32, #tpu.memory_space<vmem>>, vector<1x16x32xf32>,
    return
  }
  func.func @transform_0(%arg0: i32) -> (i32, i32, i32) {
    %c0_i32 = arith.constant 0 : i32
    %c0_i32_0 = arith.constant 0 : i32
    %c0_i32_1 = arith.constant 0 : i32
    return %arg0, %c0_i32, %c0_i32_0 : i32, i32, i32
  }
  func.func @transform_1(%arg0: i32) -> (i32, i32, i32) {
    %c0_i32 = arith.constant 0 : i32
    %c0_i32_0 = arith.constant 0 : i32
    %c0_i32_1 = arith.constant 0 : i32
    return %arg0, %c0_i32, %c0_i32_0 : i32, i32, i32
  }
  func.func @transform_2(%arg0: i32) -> (i32, i32, i32) {
    %c0_i32 = arith.constant 0 : i32
    %c0_i32_0 = arith.constant 0 : i32
    %c0_i32_1 = arith.constant 0 : i32
    return %arg0, %c0_i32, %c0_i32_0 : i32, i32, i32
  }
  func.func @transform_3(%arg0: i32) -> (i32, i32, i32) {
    %c0_i32 = arith.constant 0 : i32
    %c0_i32_0 = arith.constant 0 : i32
    %c0_i32_1 = arith.constant 0 : i32
    %c0_i32_2 = arith.constant 0 : i32
    return %c0_i32, %c0_i32_0, %c0_i32_1 : i32, i32, i32
  }
  func.func @transform_4(%arg0: i32) -> (i32, i32) {
    %c0_i32 = arith.constant 0 : i32
    %c0_i32_0 = arith.constant 0 : i32
    %c0_i32_1 = arith.constant 0 : i32
    return %c0_i32, %c0_i32_0 : i32, i32
  }
  func.func @transform_5(%arg0: i32) -> (i32, i32) {
    %c0_i32 = arith.constant 0 : i32
    %c0_i32_0 = arith.constant 0 : i32
    %c0_i32_1 = arith.constant 0 : i32
    return %c0_i32, %c0_i32_0 : i32, i32
  }
  func.func @transform_6(%arg0: i32) -> (i32, i32) {
    %c0_i32 = arith.constant 0 : i32
    %c0_i32_0 = arith.constant 0 : i32
    %c0_i32_1 = arith.constant 0 : i32
    return %c0_i32, %c0_i32_0 : i32, i32
  }
  func.func @transform_7(%arg0: i32) -> i32 {
    %c0_i32 = arith.constant 0 : i32
    %c0_i32_0 = arith.constant 0 : i32
    return %c0_i32 : i32
  }
  func.func @transform_8(%arg0: i32) -> (i32, i32) {
    %c0_i32 = arith.constant 0 : i32
    %c0_i32_0 = arith.constant 0 : i32
    %c0_i32_1 = arith.constant 0 : i32
    return %c0_i32, %c0_i32_0 : i32, i32
  }
  func.func @transform_9(%arg0: i32) -> i32 {
    %c0_i32 = arith.constant 0 : i32
    %c0_i32_0 = arith.constant 0 : i32
    return %c0_i32 : i32
  }
  func.func @transform_10(%arg0: i32) -> (i32, i32, i32) {
    %c0_i32 = arith.constant 0 : i32
    %c0_i32_0 = arith.constant 0 : i32
    %c0_i32_1 = arith.constant 0 : i32
    %c0_i32_2 = arith.constant 0 : i32
    return %c0_i32, %c0_i32_0, %c0_i32_1 : i32, i32, i32
  }
  func.func @transform_11(%arg0: i32) -> (i32, i32) {
    %c0_i32 = arith.constant 0 : i32
    %c0_i32_0 = arith.constant 0 : i32
    %c0_i32_1 = arith.constant 0 : i32
    return %c0_i32, %c0_i32_0 : i32, i32
  }
  func.func @transform_12(%arg0: i32) -> (i32, i32, i32) {
    %c0_i32 = arith.constant 0 : i32
    %c0_i32_0 = arith.constant 0 : i32
    %c0_i32_1 = arith.constant 0 : i32
    return %arg0, %c0_i32, %c0_i32_0 : i32, i32, i32
  }
}

</mosaic_0001>

<llo_original>
// kernel: attention4d_forward.3
$region0: #{attention4d_forward.3}
  #allocation0 [shape = 'u32[]', space=smem, size = 0x4, offset = 0x4, fixed_abs, tag = 'smem constant byte address 0x4 - core index']
  #allocation1 [shape = 'u32[72,128]{1,0:T(1,128)}', space=vmem, size = 0x9000, scoped, tag = 'internal scratch']
  #allocation2 [shape = 'f32[32,64]{1,0:T(8,128)}', space=vmem, size = 0x4000, scoped, tag = 'scratch operand']
  %s0 = inlined_call_operand.vmem [shape: f32[32,32], index: 0, kind: input, shape index: {}]
  %s1 = inlined_call_operand.vmem [shape: f32[32,64], index: 1, kind: input, shape index: {}]
  %s2 = inlined_call_operand.vmem [shape: f32[1,64], index: 2, kind: input, shape index: {}]
  %s3 = inlined_call_operand.vmem [shape: f32[32,64], index: 3, kind: output, shape index: {}]
  %s4 = sld [smem:[#allocation0]]
  $region30: #{attention4d_forward.3} parent=0
    _
  %s6 = ssub.s32 1, %s4
  %s7 = scalar_select 0, %s6, %s4
  // Predicated region
  $region2: #{attention4d_forward.3} parent=0 // pred_check
    _
  $region3: #{attention4d_forward.3} parent=0 // pred_check_branch
    %9 = sbr.rel (0) target = $region5
  $region4: #{attention4d_forward.3} parent=0 // pred_region
    _
  $region5: #{attention4d_forward.3} parent=0 // pred_fallthru
    _
  // Predicated region
  $region6: #{attention4d_forward.3} parent=0 // pred_check
    _
  $region7: #{attention4d_forward.3} parent=0 // pred_check_branch
    %11 = sbr.rel (0) target = $region9
  $region8: #{attention4d_forward.3} parent=0 // pred_region
    _
  $region9: #{attention4d_forward.3} parent=0 // pred_fallthru
    _
  // Predicated region
  $region10: #{attention4d_forward.3} parent=0 // pred_check
    _
  $region11: #{attention4d_forward.3} parent=0 // pred_check_branch
    %13 = sbr.rel (0) target = $region13
  $region12: #{attention4d_forward.3} parent=0 // pred_region
    _
  $region13: #{attention4d_forward.3} parent=0 // pred_fallthru
    _
  %p14 = scmp.eq.s32.totalorder 0, 0
  // Predicated region
  $region14: #{attention4d_forward.3} parent=0 // pred_check
    %p15 = pneg %p14
  $region15: #{attention4d_forward.3} parent=0 // pred_check_branch
    %17 = sbr.rel (%p15) target = $region17
  $region16: #{attention4d_forward.3} parent=0 // pred_region
    %vm18 = vcmask 523264
    %19 = vst.msk [vmem:[#allocation2] sm:$0xff] %vm18, 0.0
    %20 = vst.msk [vmem:[#allocation2 + $0x8] sm:$0xff] %vm18, 0.0
    %21 = vst.msk [vmem:[#allocation2 + $0x10] sm:$0xff] %vm18, 0.0
    %22 = vst.msk [vmem:[#allocation2 + $0x18] sm:$0xff] %vm18, 0.0
  $region17: #{attention4d_forward.3} parent=0 // pred_fallthru
    _
  %v23 = vld [vmem:[#allocation2] sm:$0xff]
  %v24 = vld [vmem:[#allocation2 + $0x8] sm:$0xff]
  %v25 = vld [vmem:[#allocation2 + $0x10] sm:$0xff]
  %v26 = vld [vmem:[#allocation2 + $0x18] sm:$0xff]
  %v27 = vld [vmem:[%s0] sm:$0xff]
  %v28 = vld [vmem:[%s0 + $0x8] sm:$0xff]
  %v29 = vld [vmem:[%s0 + $0x10] sm:$0xff]
  %v30 = vld [vmem:[%s0 + $0x18] sm:$0xff]
  %v31 = vld [vmem:[%s1] sm:$0xff]
  %v32 = vld [vmem:[%s1 + $0x8] sm:$0xff]
  %v33 = vld [vmem:[%s1 + $0x10] sm:$0xff]
  %v34 = vld [vmem:[%s1 + $0x18] sm:$0xff]
  %vm35 = vcmask 261120
  %v37 = vsel %vm35, %v27, 0
  %v40 = vsel %vm35, %v28, 0
  %v43 = vsel %vm35, %v29, 0
  %v46 = vsel %vm35, %v30, 0
  %48 = vmatpush.msra.mxu0 0.0
  %49 = vmatpush.msra.mxu0 0.0
  %50 = vmatpush.msra.mxu0 0.0
  %51 = vmatpush.msra.mxu0 0.0
  %52 = vmatpush.msra.mxu0 0.0
  %53 = vmatpush.msra.mxu0 0.0
  %54 = vmatpush.msra.mxu0 0.0
  %55 = vmatpush.msra.mxu0 0.0
  %56 = vmatpush.msra.mxu0 0.0
  %57 = vmatpush.msra.mxu0 0.0
  %58 = vmatpush.msra.mxu0 0.0
  %59 = vmatpush.msra.mxu0 0.0
  %60 = vmatpush.msra.mxu0 %v34
  %61 = vmatpush.msra.mxu0 %v33
  %62 = vmatpush.msra.mxu0 %v32
  %63 = vmatpush.msra.mxu0 %v31
  %64 = vmatmul.f32.gmra.mxu0 %v37
  %v65 = vpop.f32.mrf.mxu0
  %v66 = vadd.f32 0.0, %v65
  %67 = vmatmul.f32.gmra.mxu0 %v40
  %v68 = vpop.f32.mrf.mxu0
  %v69 = vadd.f32 0.0, %v68
  %70 = vmatmul.f32.gmra.mxu0 %v43
  %v71 = vpop.f32.mrf.mxu0
  %v72 = vadd.f32 0.0, %v71
  %73 = vmatmul.f32.gmra.mxu0 %v46
  %v74 = vpop.f32.mrf.mxu0
  %v75 = vadd.f32 0.0, %v74
  %76 = vdwg.mxu0
  %v77 = vadd.f32 %v23, %v66
  %v78 = vadd.f32 %v24, %v69
  %v79 = vadd.f32 %v25, %v72
  %v80 = vadd.f32 %v26, %v75
  %vm81 = vcmask 523264
  %82 = vst.msk [vmem:[#allocation2] sm:$0xff] %vm81, %v77
  %83 = vst.msk [vmem:[#allocation2 + $0x8] sm:$0xff] %vm81, %v78
  %84 = vst.msk [vmem:[#allocation2 + $0x10] sm:$0xff] %vm81, %v79
  %85 = vst.msk [vmem:[#allocation2 + $0x18] sm:$0xff] %vm81, %v80
  // Predicated region
  $region18: #{attention4d_forward.3} parent=0 // pred_check
    %p86 = pneg %p14
  $region19: #{attention4d_forward.3} parent=0 // pred_check_branch
    %88 = sbr.rel (%p86) target = $region21
  $region20: #{attention4d_forward.3} parent=0 // pred_region
    %v89 = vld [vmem:[#allocation2] sm:$0xff]
    %v90 = vld [vmem:[#allocation2 + $0x8] sm:$0xff]
    %v91 = vld [vmem:[#allocation2 + $0x10] sm:$0xff]
    %v92 = vld [vmem:[#allocation2 + $0x18] sm:$0xff]
    %v93 = vld [vmem:[%s2] sm:$0x1]
    %v95 = vperm.slane %v93, 0
    %v97 = vadd.f32 %v89, %v95
    %v98 = vadd.f32 %v90, %v95
    %v99 = vadd.f32 %v91, %v95
    %v100 = vadd.f32 %v92, %v95
    %101 = vst.msk [vmem:[%s3] sm:$0xff] %vm81, %v97
    %102 = vst.msk [vmem:[%s3 + $0x8] sm:$0xff] %vm81, %v98
    %103 = vst.msk [vmem:[%s3 + $0x10] sm:$0xff] %vm81, %v99
    %104 = vst.msk [vmem:[%s3 + $0x18] sm:$0xff] %vm81, %v100
  $region21: #{attention4d_forward.3} parent=0 // pred_fallthru
    _
  // Predicated region
  $region22: #{attention4d_forward.3} parent=0 // pred_check
    _
  $region23: #{attention4d_forward.3} parent=0 // pred_check_branch
    %106 = sbr.rel (0) target = $region25
  $region24: #{attention4d_forward.3} parent=0 // pred_region
    _
  $region25: #{attention4d_forward.3} parent=0 // pred_fallthru
    _
  // Predicated region
  $region26: #{attention4d_forward.3} parent=0 // pred_check
    _
  $region27: #{attention4d_forward.3} parent=0 // pred_check_branch
    %108 = sbr.rel (0) target = $region29
  $region28: #{attention4d_forward.3} parent=0 // pred_region
    _
  $region29: #{attention4d_forward.3} parent=0 // pred_fallthru
    _

// kernel: attention4d_forward.4
$region0: #{attention4d_forward.4}
  #allocation0 [shape = 'u32[]', space=smem, size = 0x4, offset = 0x4, fixed_abs, tag = 'smem constant byte address 0x4 - core index']
  #allocation1 [shape = 'u32[72,128]{1,0:T(1,128)}', space=vmem, size = 0x9000, scoped, tag = 'internal scratch']
  %s0 = inlined_call_operand.vmem [shape: f32[2,6,6,64], index: 0, kind: input, shape index: {}]
  %s1 = inlined_call_operand.vmem [shape: f32[9,64], index: 1, kind: input, shape index: {}]
  %s2 = inlined_call_operand.vmem [shape: f32[1,64], index: 2, kind: input, shape index: {}]
  %s3 = inlined_call_operand.vmem [shape: f32[2,4,4,64], index: 3, kind: output, shape index: {}]
  %s4 = sld [smem:[#allocation0]]
  $region45: #{attention4d_forward.4} parent=0
    _
  %s6 = ssub.s32 1, %s4
  %s7 = scalar_select 0, %s6, %s4
  loop: start=0, step=1, limit=4
  $region2: #{attention4d_forward.4} parent=0 // loop_pre_header
    _
  $region3: #{attention4d_forward.4} parent=0 // loop_header
    %s9 = sphi 0, %s13
    %p10 = scmp.ge.s32.totalorder %s9, 4
    %s19 = sphi 0, %s21
    %s22 = sphi 0, %s19
    %s23 = sphi 0, %s22
    %s39 = sphi 0, %s23
    %s43 = sphi 0, %s43
    %s45 = sphi 0, %s43
    %s46 = sphi 0, %s45
    %s60 = sphi 0, %s46
    %s64 = sphi 0, %s64
    %s66 = sphi 0, %s64
    %s67 = sphi 0, %s66
    %s81 = sphi 0, %s67
    %s87 = sphi 0, %s89
    %s90 = sphi 0, %s87
    %s91 = sphi 0, %s90
    %s107 = sphi 0, %s91
  $region4: #{attention4d_forward.4} parent=0 // loop_header_branch
    %12 = sbr.rel (%p10) target = $region8
  $region5: #{attention4d_forward.4} parent=0 // loop_body
    %s14 = ssub.s32 %s9, 1
    %s15 = ssub.s32 %s9, 2
    %s16 = sadd.s32 %s9, 1
    %s17 = ssub.s32 %s9, %s16
    %p18 = scmp.eq.s32.totalorder %s17, 0
    %s20 = sadd.s32 %s19, 1
    %s21 = scalar_select %p18, %s19, %s20
    %p24 = pneg %p18
    %p25 = scmp.eq.s32.totalorder %s9, 1
    %p26 = por %p24, %p25
    %p27 = scmp.ne.s32.totalorder %s19, %s22
    %p28 = scmp.eq.s32.totalorder %s9, 0
    %p29 = por %p27, %p28
    %p30 = scmp.ne.s32.totalorder %s19, %s22
    %p31 = scmp.eq.s32.totalorder %s14, 1
    %p32 = por %p30, %p31
    %p33 = scmp.ne.s32.totalorder %s22, %s23
    %p34 = scmp.eq.s32.totalorder %s14, 0
    %p35 = por %p33, %p34
    %p36 = scmp.ne.s32.totalorder %s22, %s23
    %p37 = scmp.eq.s32.totalorder %s15, 1
    %p38 = por %p36, %p37
    %p40 = scmp.ne.s32.totalorder %s23, %s39
    %p41 = scmp.eq.s32.totalorder %s15, 0
    %p42 = por %p40, %p41
    %s44 = sadd.s32 %s43, 1
    %p47 = scmp.eq.s32.totalorder %s9, 1
    %p48 = scmp.ne.s32.totalorder %s43, %s45
    %p49 = scmp.eq.s32.totalorder %s9, 0
    %p50 = por %p48, %p49
    %p51 = scmp.ne.s32.totalorder %s43, %s45
    %p52 = scmp.eq.s32.totalorder %s14, 1
    %p53 = por %p51, %p52
    %p54 = scmp.ne.s32.totalorder %s45, %s46
    %p55 = scmp.eq.s32.totalorder %s14, 0
    %p56 = por %p54, %p55
    %p57 = scmp.ne.s32.totalorder %s45, %s46
    %p58 = scmp.eq.s32.totalorder %s15, 1
    %p59 = por %p57, %p58
    %p61 = scmp.ne.s32.totalorder %s46, %s60
    %p62 = scmp.eq.s32.totalorder %s15, 0
    %p63 = por %p61, %p62
    %s65 = sadd.s32 %s64, 1
    %p68 = scmp.eq.s32.totalorder %s9, 1
    %p69 = scmp.ne.s32.totalorder %s64, %s66
    %p70 = scmp.eq.s32.totalorder %s9, 0
    %p71 = por %p69, %p70
    %p72 = scmp.ne.s32.totalorder %s64, %s66
    %p73 = scmp.eq.s32.totalorder %s14, 1
    %p74 = por %p72, %p73
    %p75 = scmp.ne.s32.totalorder %s66, %s67
    %p76 = scmp.eq.s32.totalorder %s14, 0
    %p77 = por %p75, %p76
    %p78 = scmp.ne.s32.totalorder %s66, %s67
    %p79 = scmp.eq.s32.totalorder %s15, 1
    %p80 = por %p78, %p79
    %p82 = scmp.ne.s32.totalorder %s67, %s81
    %p83 = scmp.eq.s32.totalorder %s15, 0
    %p84 = por %p82, %p83
    %s85 = ssub.s32 %s9, %s16
    %p86 = scmp.eq.s32.totalorder %s85, 0
    %s88 = sadd.s32 %s87, 1
    %s89 = scalar_select %p86, %s87, %s88
    %p92 = pneg %p86
    %p93 = scmp.eq.s32.totalorder %s9, 1
    %p94 = por %p92, %p93
    %p95 = scmp.ne.s32.totalorder %s87, %s90
    %p96 = scmp.eq.s32.totalorder %s9, 0
    %p97 = por %p95, %p96
    %p98 = scmp.ne.s32.totalorder %s87, %s90
    %p99 = scmp.eq.s32.totalorder %s14, 1
    %p100 = por %p98, %p99
    %p101 = scmp.ne.s32.totalorder %s90, %s91
    %p102 = scmp.eq.s32.totalorder %s14, 0
    %p103 = por %p101, %p102
    %p104 = scmp.ne.s32.totalorder %s90, %s91
    %p105 = scmp.eq.s32.totalorder %s15, 1
    %p106 = por %p104, %p105
    %p108 = scmp.ne.s32.totalorder %s91, %s107
    %p109 = scmp.eq.s32.totalorder %s15, 0
    %p110 = por %p108, %p109
    %p111 = scmp.le.s32.totalorder 1, %s9
    %p112 = scmp.lt.s32.totalorder %s9, 3
    %p113 = pnand %p111, %p112
    %p114 = pneg %p113
    // Predicated region
    $region9: #{attention4d_forward.4} parent=5 // pred_check
      _
    $region10: #{attention4d_forward.4} parent=5 // pred_check_branch
      %116 = sbr.rel (%p113) target = $region12
    $region11: #{attention4d_forward.4} parent=5 // pred_region
      %s117 = ssub.s32 %s9, 1
      // Predicated region
      $region13: #{attention4d_forward.4} parent=11 // pred_check
        %p118 = pneg %p56
      $region14: #{attention4d_forward.4} parent=11 // pred_check_branch
        %120 = sbr.rel (%p118) target = $region16
      $region15: #{attention4d_forward.4} parent=11 // pred_region
        _
      $region16: #{attention4d_forward.4} parent=11 // pred_fallthru
        _
      // Predicated region
      $region17: #{attention4d_forward.4} parent=11 // pred_check
        %p121 = pneg %p77
      $region18: #{attention4d_forward.4} parent=11 // pred_check_branch
        %123 = sbr.rel (%p121) target = $region20
      $region19: #{attention4d_forward.4} parent=11 // pred_region
        _
      $region20: #{attention4d_forward.4} parent=11 // pred_fallthru
        _
    $region12: #{attention4d_forward.4} parent=5 // pred_fallthru
      _
    %p124 = scmp.lt.s32.totalorder %s9, 2
    // Predicated region
    $region21: #{attention4d_forward.4} parent=5 // pred_check
      %p125 = pneg %p124
    $region22: #{attention4d_forward.4} parent=5 // pred_check_branch
      %127 = sbr.rel (%p125) target = $region24
    $region23: #{attention4d_forward.4} parent=5 // pred_region
      // Predicated region
      $region25: #{attention4d_forward.4} parent=23 // pred_check
        %p128 = pneg %p29
      $region26: #{attention4d_forward.4} parent=23 // pred_check_branch
        %130 = sbr.rel (%p128) target = $region28
      $region27: #{attention4d_forward.4} parent=23 // pred_region
        %p131 = scmp.lt.s32.totalorder %s9, 1
        %s132 = scalar_select %p131, %s9, 1
        %s133 = smul.addr %s132, 6
        %s134 = smul.addr %s133, 8
        %s135 = scalar_lea.vmem %s0, %s134
      $region28: #{attention4d_forward.4} parent=23 // pred_fallthru
        _
    $region24: #{attention4d_forward.4} parent=5 // pred_fallthru
      _
    %p136 = scmp.le.s32.totalorder 1, %s9
    %p137 = scmp.lt.s32.totalorder %s9, 3
    %p138 = pnand %p136, %p137
    %p139 = pneg %p138
    // Predicated region
    $region29: #{attention4d_forward.4} parent=5 // pred_check
      _
    $region30: #{attention4d_forward.4} parent=5 // pred_check_branch
      %141 = sbr.rel (%p138) target = $region32
    $region31: #{attention4d_forward.4} parent=5 // pred_region
      %s142 = ssub.s32 %s9, 1
      %p143 = scmp.lt.s32.totalorder %s14, 1
      %s144 = scalar_select %p143, %s14, 1
      %s145 = smul.addr %s144, 6
      %s146 = smul.addr %s145, 8
      %s147 = scalar_lea.vmem %s0, %s146
      %p148 = pneg %p35
      %p149 = pneg %p32
      %p150 = pneg %p56
      %p151 = pneg %p53
      %p152 = pneg %p77
      %p153 = pneg %p74
      %p154 = pneg %p103
      %p155 = pneg %p100
      %p156 = scmp.lt.s32.totalorder %s14, 1
      %s157 = scalar_select %p156, %s14, 1
      %s158 = smul.addr %s157, 4
      %s159 = smul.addr %s158, 4
      %s160 = scalar_lea.vmem %s3, %s159
      %p161 = scmp.lt.s32.totalorder %s14, 1
      %s162 = scalar_select %p161, %s14, 1
      %s163 = smul.addr %s162, 6
      %s164 = smul.addr %s163, 8
      %s165 = scalar_lea.vmem %s0, %s164
      %p166 = scmp.lt.s32.totalorder %s14, 1
      %s167 = scalar_select %p166, %s14, 1
      %s168 = smul.addr %s167, 4
      %s169 = smul.addr %s168, 4
      %s170 = scalar_lea.vmem %s3, %s169
      %v171 = vld [vmem:[%s165] sm:$0x3f]
      %v172 = vld [vmem:[%s165 + $0x8] sm:$0x3f]
      %v173 = vld [vmem:[%s165 + $0x10] sm:$0x3f]
      %v174 = vld [vmem:[%s165 + $0x18] sm:$0x3f]
      %v175 = vld [vmem:[%s165 + $0x20] sm:$0x3f]
      %v176 = vld [vmem:[%s165 + $0x28] sm:$0x3f]
      %v177 = vld [vmem:[%s1] sm:$0xff]
      %v178 = vld [vmem:[%s1 + $0x8] sm:$0x1]
      %v179 = vperm.slane %v177, 0
      %v180 = vmul.f32 %v171, %v179
      %v181 = vmul.f32 %v172, %v179
      %v182 = vmul.f32 %v173, %v179
      %v183 = vmul.f32 %v174, %v179
      %v184 = vadd.f32 %v180, 0.0
      %v185 = vadd.f32 %v181, 0.0
      %v186 = vadd.f32 %v182, 0.0
      %v187 = vadd.f32 %v183, 0.0
      %v188 = vperm.slane %v177, 1
      %v189 = vmul.f32 %v171, %v188
      %v190 = vmul.f32 %v172, %v188
      %v191 = vmul.f32 %v173, %v188
      %v192 = vmul.f32 %v174, %v188
      %v197 = vrot.slane %v189, 1
      %v198 = vrot.slane %v190, 1
      %v199 = vrot.slane %v191, 1
      %v200 = vrot.slane %v192, 1
      %v205 = vadd.f32 %v184, %v197
      %v206 = vadd.f32 %v185, %v198
      %v207 = vadd.f32 %v186, %v199
      %v208 = vadd.f32 %v187, %v200
      %v209 = vperm.slane %v177, 2
      %v210 = vmul.f32 %v171, %v209
      %v211 = vmul.f32 %v172, %v209
      %v212 = vmul.f32 %v173, %v209
      %v213 = vmul.f32 %v174, %v209
      %v218 = vrot.slane %v210, 2
      %v219 = vrot.slane %v211, 2
      %v220 = vrot.slane %v212, 2
      %v221 = vrot.slane %v213, 2
      %v226 = vadd.f32 %v205, %v218
      %v227 = vadd.f32 %v206, %v219
      %v228 = vadd.f32 %v207, %v220
      %v229 = vadd.f32 %v208, %v221
      %v230 = vperm.slane %v177, 3
      %v231 = vmul.f32 %v172, %v230
      %v232 = vmul.f32 %v173, %v230
      %v233 = vmul.f32 %v174, %v230
      %v234 = vmul.f32 %v175, %v230
      %v235 = vadd.f32 %v226, %v231
      %v236 = vadd.f32 %v227, %v232
      %v237 = vadd.f32 %v228, %v233
      %v238 = vadd.f32 %v229, %v234
      %v239 = vperm.slane %v177, 4
      %v240 = vmul.f32 %v172, %v239
      %v241 = vmul.f32 %v173, %v239
      %v242 = vmul.f32 %v174, %v239
      %v243 = vmul.f32 %v175, %v239
      %v248 = vrot.slane %v240, 1
      %v249 = vrot.slane %v241, 1
      %v250 = vrot.slane %v242, 1
      %v251 = vrot.slane %v243, 1
      %v256 = vadd.f32 %v235, %v248
      %v257 = vadd.f32 %v236, %v249
      %v258 = vadd.f32 %v237, %v250
      %v259 = vadd.f32 %v238, %v251
      %v260 = vperm.slane %v177, 5
      %v261 = vmul.f32 %v172, %v260
      %v262 = vmul.f32 %v173, %v260
      %v263 = vmul.f32 %v174, %v260
      %v264 = vmul.f32 %v175, %v260
      %v269 = vrot.slane %v261, 2
      %v270 = vrot.slane %v262, 2
      %v271 = vrot.slane %v263, 2
      %v272 = vrot.slane %v264, 2
      %v277 = vadd.f32 %v256, %v269
      %v278 = vadd.f32 %v257, %v270
      %v279 = vadd.f32 %v258, %v271
      %v280 = vadd.f32 %v259, %v272
      %v281 = vperm.slane %v177, 6
      %v282 = vmul.f32 %v173, %v281
      %v283 = vmul.f32 %v174, %v281
      %v284 = vmul.f32 %v175, %v281
      %v285 = vmul.f32 %v176, %v281
      %v286 = vadd.f32 %v277, %v282
      %v287 = vadd.f32 %v278, %v283
      %v288 = vadd.f32 %v279, %v284
      %v289 = vadd.f32 %v280, %v285
      %v290 = vperm.slane %v177, 7
      %v291 = vmul.f32 %v173, %v290
      %v292 = vmul.f32 %v174, %v290
      %v293 = vmul.f32 %v175, %v290
      %v294 = vmul.f32 %v176, %v290
      %v299 = vrot.slane %v291, 1
      %v300 = vrot.slane %v292, 1
      %v301 = vrot.slane %v293, 1
      %v302 = vrot.slane %v294, 1
      %v307 = vadd.f32 %v286, %v299
      %v308 = vadd.f32 %v287, %v300
      %v309 = vadd.f32 %v288, %v301
      %v310 = vadd.f32 %v289, %v302
      %v311 = vperm.slane %v178, 0
      %v312 = vmul.f32 %v173, %v311
      %v313 = vmul.f32 %v174, %v311
      %v314 = vmul.f32 %v175, %v311
      %v315 = vmul.f32 %v176, %v311
      %v320 = vrot.slane %v312, 2
      %v321 = vrot.slane %v313, 2
      %v322 = vrot.slane %v314, 2
      %v323 = vrot.slane %v315, 2
      %v328 = vadd.f32 %v307, %v320
      %v329 = vadd.f32 %v308, %v321
      %v330 = vadd.f32 %v309, %v322
      %v331 = vadd.f32 %v310, %v323
      %v332 = vld [vmem:[%s2] sm:$0x1]
      %v334 = vperm.slane %v332, 0
      %v336 = vadd.f32 %v328, %v334
      %v337 = vadd.f32 %v329, %v334
      %v338 = vadd.f32 %v330, %v334
      %v339 = vadd.f32 %v331, %v334
      %vm340 = vcmask 519168
      %341 = vst.msk [vmem:[%s170] sm:$0xf] %vm340, %v336
      %342 = vst.msk [vmem:[%s170 + $0x4] sm:$0xf] %vm340, %v337
      %343 = vst.msk [vmem:[%s170 + $0x8] sm:$0xf] %vm340, %v338
      %344 = vst.msk [vmem:[%s170 + $0xc] sm:$0xf] %vm340, %v339
      %p345 = scmp.lt.s32.totalorder %s14, 1
      %s346 = scalar_select %p345, %s14, 1
      %s347 = smul.addr %s346, 4
      %s348 = smul.addr %s347, 4
      %s349 = scalar_lea.vmem %s3, %s348
      // Predicated region
      $region33: #{attention4d_forward.4} parent=31 // pred_check
        %p350 = pneg %p100
      $region34: #{attention4d_forward.4} parent=31 // pred_check_branch
        %352 = sbr.rel (%p350) target = $region36
      $region35: #{attention4d_forward.4} parent=31 // pred_region
        _
      $region36: #{attention4d_forward.4} parent=31 // pred_fallthru
        _
    $region32: #{attention4d_forward.4} parent=5 // pred_fallthru
      _
    %p353 = scmp.le.s32.totalorder 2, %s9
    // Predicated region
    $region37: #{attention4d_forward.4} parent=5 // pred_check
      %p354 = pneg %p353
    $region38: #{attention4d_forward.4} parent=5 // pred_check_branch
      %356 = sbr.rel (%p354) target = $region40
    $region39: #{attention4d_forward.4} parent=5 // pred_region
      %s357 = ssub.s32 %s9, 2
      // Predicated region
      $region41: #{attention4d_forward.4} parent=39 // pred_check
        %p358 = pneg %p106
      $region42: #{attention4d_forward.4} parent=39 // pred_check_branch
        %360 = sbr.rel (%p358) target = $region44
      $region43: #{attention4d_forward.4} parent=39 // pred_region
        %p361 = scmp.lt.s32.totalorder %s15, 1
        %s362 = scalar_select %p361, %s15, 1
        %s363 = smul.addr %s362, 4
        %s364 = smul.addr %s363, 4
        %s365 = scalar_lea.vmem %s3, %s364
      $region44: #{attention4d_forward.4} parent=39 // pred_fallthru
        _
    $region40: #{attention4d_forward.4} parent=5 // pred_fallthru
      _
  $region6: #{attention4d_forward.4} parent=0 // loop_footer
    %s13 = sadd.s32 1, %s9
  $region7: #{attention4d_forward.4} parent=0 // loop_footer_branch
    %8 = sbr.rel target = $region3
  $region8: #{attention4d_forward.4} parent=0 // loop_exit
    _

// kernel: attention4d_forward.5
$region0: #{attention4d_forward.5}
  #allocation0 [shape = 'u32[]', space=smem, size = 0x4, offset = 0x4, fixed_abs, tag = 'smem constant byte address 0x4 - core index']
  #allocation1 [shape = 'u32[72,128]{1,0:T(1,128)}', space=vmem, size = 0x9000, scoped, tag = 'internal scratch']
  %s0 = inlined_call_operand.vmem [shape: f32[2,16,32], index: 0, kind: input, shape index: {}]
  %s1 = inlined_call_operand.vmem [shape: f32[2,16,64], index: 1, kind: input, shape index: {}]
  %s2 = inlined_call_operand.vmem [shape: f32[2,16,64], index: 2, kind: input, shape index: {}]
  %s3 = inlined_call_operand.vmem [shape: f32[4,16,16], index: 3, kind: input, shape index: {}]
  %s4 = inlined_call_operand.vmem [shape: f32[32,64], index: 4, kind: input, shape index: {}]
  %s5 = inlined_call_operand.vmem [shape: f32[1,64], index: 5, kind: input, shape index: {}]
  %s6 = inlined_call_operand.vmem [shape: f32[4,4], index: 6, kind: input, shape index: {}]
  %s7 = inlined_call_operand.vmem [shape: f32[4], index: 7, kind: input, shape index: {}]
  %s8 = inlined_call_operand.vmem [shape: f32[4,4], index: 8, kind: input, shape index: {}]
  %s9 = inlined_call_operand.vmem [shape: f32[4], index: 9, kind: input, shape index: {}]
  %s10 = inlined_call_operand.vmem [shape: f32[4,16,32], index: 10, kind: input, shape index: {}]
  %s11 = inlined_call_operand.vmem [shape: f32[1,32], index: 11, kind: input, shape index: {}]
  %s12 = inlined_call_operand.hbm [shape: f32[2,16,32], index: 12, kind: output, shape index: {}]
  %s13 = sld [smem:[#allocation0]]
  $region97: #{attention4d_forward.5} parent=0
    _
  %s15 = ssub.s32 1, %s13
  %s16 = scalar_select 0, %s15, %s13
  $region1: #{attention4d_forward.5} parent=0
    #allocation2 [shape = 'u8[2048]{0}', space=smem, size = 0x800, scoped, tag = 'input window, operand 6, single buffered']
    #allocation3 [shape = 's32[2]{0}', space=sflag, size = 0x8, scoped, tag = 'scoped memory for attention4d_forward.5']
    #allocation4 [shape = 's32[2]{0}', space=sflag, size = 0x8, scoped, tag = 'scoped memory for attention4d_forward.5']
    #allocation5 [shape = 'u8[512]{0}', space=smem, size = 0x200, scoped, tag = 'input window, operand 7, single buffered']
    #allocation6 [shape = 's32[1]{0}', space=sflag, size = 0x4, scoped, tag = 'scoped memory for attention4d_forward.5']
    #allocation7 [shape = 'u8[2048]{0}', space=smem, size = 0x800, scoped, tag = 'input window, operand 8, single buffered']
    #allocation8 [shape = 'u8[512]{0}', space=smem, size = 0x200, scoped, tag = 'input window, operand 9, single buffered']
    #allocation9 [shape = 's32[1]{0}', space=sflag, size = 0x4, scoped, tag = 'scoped memory for attention4d_forward.5']
    #allocation10 [shape = 'u8[16384]{0}', space=vmem, size = 0x4000, scoped, tag = 'output window, operand 0']
    %17 = vsyncpa [#allocation4], 0
    %18 = vsyncpa [#allocation6], 0
    %19 = vsyncpa [#allocation9], 0
    %20 = vsyncpa [#allocation3], 0
    %s21 = scalar_lea.sflag [#allocation3], 1
    %22 = vsyncpa %s21, 0
    loop: start=0, step=1, limit=4
    $region2: #{attention4d_forward.5} parent=1 // loop_pre_header
      _
    $region3: #{attention4d_forward.5} parent=1 // loop_header
      %s24 = sphi 0, %s28
      %p25 = scmp.ge.s32.totalorder %s24, 4
      %s34 = sphi 0, %s36
      %s37 = sphi 0, %s34
      %s38 = sphi 0, %s37
      %s54 = sphi 0, %s38
      %s60 = sphi 0, %s62
      %s63 = sphi 0, %s60
      %s64 = sphi 0, %s63
      %s80 = sphi 0, %s64
      %s86 = sphi 0, %s88
      %s89 = sphi 0, %s86
      %s90 = sphi 0, %s89
      %s106 = sphi 0, %s90
      %s110 = sphi 0, %s110
      %s112 = sphi 0, %s110
      %s113 = sphi 0, %s112
      %s127 = sphi 0, %s113
      %s131 = sphi 0, %s131
      %s133 = sphi 0, %s131
      %s134 = sphi 0, %s133
      %s148 = sphi 0, %s134
      %s152 = sphi 0, %s152
      %s154 = sphi 0, %s152
      %s155 = sphi 0, %s154
      %s169 = sphi 0, %s155
      %s173 = sphi 0, %s173
      %s175 = sphi 0, %s173
      %s176 = sphi 0, %s175
      %s190 = sphi 0, %s176
      %s194 = sphi 0, %s194
      %s196 = sphi 0, %s194
      %s197 = sphi 0, %s196
      %s211 = sphi 0, %s197
      %s215 = sphi 0, %s215
      %s217 = sphi 0, %s215
      %s218 = sphi 0, %s217
      %s232 = sphi 0, %s218
      %s236 = sphi 0, %s236
      %s238 = sphi 0, %s236
      %s239 = sphi 0, %s238
      %s253 = sphi 0, %s239
      %s257 = sphi 0, %s257
      %s259 = sphi 0, %s257
      %s260 = sphi 0, %s259
      %s274 = sphi 0, %s260
      %s278 = sphi 0, %s278
      %s280 = sphi 0, %s278
      %s281 = sphi 0, %s280
      %s295 = sphi 0, %s281
      %s301 = sphi 0, %s303
      %s304 = sphi 0, %s301
      %s305 = sphi 0, %s304
      %s321 = sphi 0, %s305
    $region4: #{attention4d_forward.5} parent=1 // loop_header_branch
      %27 = sbr.rel (%p25) target = $region8
    $region5: #{attention4d_forward.5} parent=1 // loop_body
      %s29 = ssub.s32 %s24, 1
      %s30 = ssub.s32 %s24, 2
      %s31 = sadd.s32 %s24, 1
      %s32 = ssub.s32 %s24, %s31
      %p33 = scmp.eq.s32.totalorder %s32, 0
      %s35 = sadd.s32 %s34, 1
      %s36 = scalar_select %p33, %s34, %s35
      %p39 = pneg %p33
      %p40 = scmp.eq.s32.totalorder %s24, 1
      %p41 = por %p39, %p40
      %p42 = scmp.ne.s32.totalorder %s34, %s37
      %p43 = scmp.eq.s32.totalorder %s24, 0
      %p44 = por %p42, %p43
      %p45 = scmp.ne.s32.totalorder %s34, %s37
      %p46 = scmp.eq.s32.totalorder %s29, 1
      %p47 = por %p45, %p46
      %p48 = scmp.ne.s32.totalorder %s37, %s38
      %p49 = scmp.eq.s32.totalorder %s29, 0
      %p50 = por %p48, %p49
      %p51 = scmp.ne.s32.totalorder %s37, %s38
      %p52 = scmp.eq.s32.totalorder %s30, 1
      %p53 = por %p51, %p52
      %p55 = scmp.ne.s32.totalorder %s38, %s54
      %p56 = scmp.eq.s32.totalorder %s30, 0
      %p57 = por %p55, %p56
      %s58 = ssub.s32 %s24, %s31
      %p59 = scmp.eq.s32.totalorder %s58, 0
      %s61 = sadd.s32 %s60, 1
      %s62 = scalar_select %p59, %s60, %s61
      %p65 = pneg %p59
      %p66 = scmp.eq.s32.totalorder %s24, 1
      %p67 = por %p65, %p66
      %p68 = scmp.ne.s32.totalorder %s60, %s63
      %p69 = scmp.eq.s32.totalorder %s24, 0
      %p70 = por %p68, %p69
      %p71 = scmp.ne.s32.totalorder %s60, %s63
      %p72 = scmp.eq.s32.totalorder %s29, 1
      %p73 = por %p71, %p72
      %p74 = scmp.ne.s32.totalorder %s63, %s64
      %p75 = scmp.eq.s32.totalorder %s29, 0
      %p76 = por %p74, %p75
      %p77 = scmp.ne.s32.totalorder %s63, %s64
      %p78 = scmp.eq.s32.totalorder %s30, 1
      %p79 = por %p77, %p78
      %p81 = scmp.ne.s32.totalorder %s64, %s80
      %p82 = scmp.eq.s32.totalorder %s30, 0
      %p83 = por %p81, %p82
      %s84 = ssub.s32 %s24, %s31
      %p85 = scmp.eq.s32.totalorder %s84, 0
      %s87 = sadd.s32 %s86, 1
      %s88 = scalar_select %p85, %s86, %s87
      %p91 = pneg %p85
      %p92 = scmp.eq.s32.totalorder %s24, 1
      %p93 = por %p91, %p92
      %p94 = scmp.ne.s32.totalorder %s86, %s89
      %p95 = scmp.eq.s32.totalorder %s24, 0
      %p96 = por %p94, %p95
      %p97 = scmp.ne.s32.totalorder %s86, %s89
      %p98 = scmp.eq.s32.totalorder %s29, 1
      %p99 = por %p97, %p98
      %p100 = scmp.ne.s32.totalorder %s89, %s90
      %p101 = scmp.eq.s32.totalorder %s29, 0
      %p102 = por %p100, %p101
      %p103 = scmp.ne.s32.totalorder %s89, %s90
      %p104 = scmp.eq.s32.totalorder %s30, 1
      %p105 = por %p103, %p104
      %p107 = scmp.ne.s32.totalorder %s90, %s106
      %p108 = scmp.eq.s32.totalorder %s30, 0
      %p109 = por %p107, %p108
      %s111 = sadd.s32 %s110, 1
      %p114 = scmp.eq.s32.totalorder %s24, 1
      %p115 = scmp.ne.s32.totalorder %s110, %s112
      %p116 = scmp.eq.s32.totalorder %s24, 0
      %p117 = por %p115, %p116
      %p118 = scmp.ne.s32.totalorder %s110, %s112
      %p119 = scmp.eq.s32.totalorder %s29, 1
      %p120 = por %p118, %p119
      %p121 = scmp.ne.s32.totalorder %s112, %s113
      %p122 = scmp.eq.s32.totalorder %s29, 0
      %p123 = por %p121, %p122
      %p124 = scmp.ne.s32.totalorder %s112, %s113
      %p125 = scmp.eq.s32.totalorder %s30, 1
      %p126 = por %p124, %p125
      %p128 = scmp.ne.s32.totalorder %s113, %s127
      %p129 = scmp.eq.s32.totalorder %s30, 0
      %p130 = por %p128, %p129
      %s132 = sadd.s32 %s131, 1
      %p135 = scmp.eq.s32.totalorder %s24, 1
      %p136 = scmp.ne.s32.totalorder %s131, %s133
      %p137 = scmp.eq.s32.totalorder %s24, 0
      %p138 = por %p136, %p137
      %p139 = scmp.ne.s32.totalorder %s131, %s133
      %p140 = scmp.eq.s32.totalorder %s29, 1
      %p141 = por %p139, %p140
      %p142 = scmp.ne.s32.totalorder %s133, %s134
      %p143 = scmp.eq.s32.totalorder %s29, 0
      %p144 = por %p142, %p143
      %p145 = scmp.ne.s32.totalorder %s133, %s134
      %p146 = scmp.eq.s32.totalorder %s30, 1
      %p147 = por %p145, %p146
      %p149 = scmp.ne.s32.totalorder %s134, %s148
      %p150 = scmp.eq.s32.totalorder %s30, 0
      %p151 = por %p149, %p150
      %s153 = sadd.s32 %s152, 1
      %p156 = scmp.eq.s32.totalorder %s24, 1
      %p157 = scmp.ne.s32.totalorder %s152, %s154
      %p158 = scmp.eq.s32.totalorder %s24, 0
      %p159 = por %p157, %p158
      %p160 = scmp.ne.s32.totalorder %s152, %s154
      %p161 = scmp.eq.s32.totalorder %s29, 1
      %p162 = por %p160, %p161
      %p163 = scmp.ne.s32.totalorder %s154, %s155
      %p164 = scmp.eq.s32.totalorder %s29, 0
      %p165 = por %p163, %p164
      %p166 = scmp.ne.s32.totalorder %s154, %s155
      %p167 = scmp.eq.s32.totalorder %s30, 1
      %p168 = por %p166, %p167
      %p170 = scmp.ne.s32.totalorder %s155, %s169
      %p171 = scmp.eq.s32.totalorder %s30, 0
      %p172 = por %p170, %p171
      %s174 = sadd.s32 %s173, 1
      %p177 = scmp.eq.s32.totalorder %s24, 1
      %p178 = scmp.ne.s32.totalorder %s173, %s175
      %p179 = scmp.eq.s32.totalorder %s24, 0
      %p180 = por %p178, %p179
      %p181 = scmp.ne.s32.totalorder %s173, %s175
      %p182 = scmp.eq.s32.totalorder %s29, 1
      %p183 = por %p181, %p182
      %p184 = scmp.ne.s32.totalorder %s175, %s176
      %p185 = scmp.eq.s32.totalorder %s29, 0
      %p186 = por %p184, %p185
      %p187 = scmp.ne.s32.totalorder %s175, %s176
      %p188 = scmp.eq.s32.totalorder %s30, 1
      %p189 = por %p187, %p188
      %p191 = scmp.ne.s32.totalorder %s176, %s190
      %p192 = scmp.eq.s32.totalorder %s30, 0
      %p193 = por %p191, %p192
      %s195 = sadd.s32 %s194, 1
      %p198 = scmp.eq.s32.totalorder %s24, 1
      %p199 = scmp.ne.s32.totalorder %s194, %s196
      %p200 = scmp.eq.s32.totalorder %s24, 0
      %p201 = por %p199, %p200
      %p202 = scmp.ne.s32.totalorder %s194, %s196
      %p203 = scmp.eq.s32.totalorder %s29, 1
      %p204 = por %p202, %p203
      %p205 = scmp.ne.s32.totalorder %s196, %s197
      %p206 = scmp.eq.s32.totalorder %s29, 0
      %p207 = por %p205, %p206
      %p208 = scmp.ne.s32.totalorder %s196, %s197
      %p209 = scmp.eq.s32.totalorder %s30, 1
      %p210 = por %p208, %p209
      %p212 = scmp.ne.s32.totalorder %s197, %s211
      %p213 = scmp.eq.s32.totalorder %s30, 0
      %p214 = por %p212, %p213
      %s216 = sadd.s32 %s215, 1
      %p219 = scmp.eq.s32.totalorder %s24, 1
      %p220 = scmp.ne.s32.totalorder %s215, %s217
      %p221 = scmp.eq.s32.totalorder %s24, 0
      %p222 = por %p220, %p221
      %p223 = scmp.ne.s32.totalorder %s215, %s217
      %p224 = scmp.eq.s32.totalorder %s29, 1
      %p225 = por %p223, %p224
      %p226 = scmp.ne.s32.totalorder %s217, %s218
      %p227 = scmp.eq.s32.totalorder %s29, 0
      %p228 = por %p226, %p227
      %p229 = scmp.ne.s32.totalorder %s217, %s218
      %p230 = scmp.eq.s32.totalorder %s30, 1
      %p231 = por %p229, %p230
      %p233 = scmp.ne.s32.totalorder %s218, %s232
      %p234 = scmp.eq.s32.totalorder %s30, 0
      %p235 = por %p233, %p234
      %s237 = sadd.s32 %s236, 1
      %p240 = scmp.eq.s32.totalorder %s24, 1
      %p241 = scmp.ne.s32.totalorder %s236, %s238
      %p242 = scmp.eq.s32.totalorder %s24, 0
      %p243 = por %p241, %p242
      %p244 = scmp.ne.s32.totalorder %s236, %s238
      %p245 = scmp.eq.s32.totalorder %s29, 1
      %p246 = por %p244, %p245
      %p247 = scmp.ne.s32.totalorder %s238, %s239
      %p248 = scmp.eq.s32.totalorder %s29, 0
      %p249 = por %p247, %p248
      %p250 = scmp.ne.s32.totalorder %s238, %s239
      %p251 = scmp.eq.s32.totalorder %s30, 1
      %p252 = por %p250, %p251
      %p254 = scmp.ne.s32.totalorder %s239, %s253
      %p255 = scmp.eq.s32.totalorder %s30, 0
      %p256 = por %p254, %p255
      %s258 = sadd.s32 %s257, 1
      %p261 = scmp.eq.s32.totalorder %s24, 1
      %p262 = scmp.ne.s32.totalorder %s257, %s259
      %p263 = scmp.eq.s32.totalorder %s24, 0
      %p264 = por %p262, %p263
      %p265 = scmp.ne.s32.totalorder %s257, %s259
      %p266 = scmp.eq.s32.totalorder %s29, 1
      %p267 = por %p265, %p266
      %p268 = scmp.ne.s32.totalorder %s259, %s260
      %p269 = scmp.eq.s32.totalorder %s29, 0
      %p270 = por %p268, %p269
      %p271 = scmp.ne.s32.totalorder %s259, %s260
      %p272 = scmp.eq.s32.totalorder %s30, 1
      %p273 = por %p271, %p272
      %p275 = scmp.ne.s32.totalorder %s260, %s274
      %p276 = scmp.eq.s32.totalorder %s30, 0
      %p277 = por %p275, %p276
      %s279 = sadd.s32 %s278, 1
      %p282 = scmp.eq.s32.totalorder %s24, 1
      %p283 = scmp.ne.s32.totalorder %s278, %s280
      %p284 = scmp.eq.s32.totalorder %s24, 0
      %p285 = por %p283, %p284
      %p286 = scmp.ne.s32.totalorder %s278, %s280
      %p287 = scmp.eq.s32.totalorder %s29, 1
      %p288 = por %p286, %p287
      %p289 = scmp.ne.s32.totalorder %s280, %s281
      %p290 = scmp.eq.s32.totalorder %s29, 0
      %p291 = por %p289, %p290
      %p292 = scmp.ne.s32.totalorder %s280, %s281
      %p293 = scmp.eq.s32.totalorder %s30, 1
      %p294 = por %p292, %p293
      %p296 = scmp.ne.s32.totalorder %s281, %s295
      %p297 = scmp.eq.s32.totalorder %s30, 0
      %p298 = por %p296, %p297
      %s299 = ssub.s32 %s24, %s31
      %p300 = scmp.eq.s32.totalorder %s299, 0
      %s302 = sadd.s32 %s301, 1
      %s303 = scalar_select %p300, %s301, %s302
      %p306 = pneg %p300
      %p307 = scmp.eq.s32.totalorder %s24, 1
      %p308 = por %p306, %p307
      %p309 = scmp.ne.s32.totalorder %s301, %s304
      %p310 = scmp.eq.s32.totalorder %s24, 0
      %p311 = por %p309, %p310
      %p312 = scmp.ne.s32.totalorder %s301, %s304
      %p313 = scmp.eq.s32.totalorder %s29, 1
      %p314 = por %p312, %p313
      %p315 = scmp.ne.s32.totalorder %s304, %s305
      %p316 = scmp.eq.s32.totalorder %s29, 0
      %p317 = por %p315, %p316
      %p318 = scmp.ne.s32.totalorder %s304, %s305
      %p319 = scmp.eq.s32.totalorder %s30, 1
      %p320 = por %p318, %p319
      %p322 = scmp.ne.s32.totalorder %s305, %s321
      %p323 = scmp.eq.s32.totalorder %s30, 0
      %p324 = por %p322, %p323
      %p325 = scmp.le.s32.totalorder 1, %s24
      %p326 = scmp.lt.s32.totalorder %s24, 3
      %p327 = pnand %p325, %p326
      %p328 = pneg %p327
      // Predicated region
      $region9: #{attention4d_forward.5} parent=5 // pred_check
        _
      $region10: #{attention4d_forward.5} parent=5 // pred_check_branch
        %330 = sbr.rel (%p327) target = $region12
      $region11: #{attention4d_forward.5} parent=5 // pred_region
        %s331 = ssub.s32 %s24, 1
        // Predicated region
        $region13: #{attention4d_forward.5} parent=11 // pred_check
          %p332 = pneg %p123
        $region14: #{attention4d_forward.5} parent=11 // pred_check_branch
          %334 = sbr.rel (%p332) target = $region16
        $region15: #{attention4d_forward.5} parent=11 // pred_region
          _
        $region16: #{attention4d_forward.5} parent=11 // pred_fallthru
          _
        // Predicated region
        $region17: #{attention4d_forward.5} parent=11 // pred_check
          %p335 = pneg %p144
        $region18: #{attention4d_forward.5} parent=11 // pred_check_branch
          %337 = sbr.rel (%p335) target = $region20
        $region19: #{attention4d_forward.5} parent=11 // pred_region
          _
        $region20: #{attention4d_forward.5} parent=11 // pred_fallthru
          _
        // Predicated region
        $region21: #{attention4d_forward.5} parent=11 // pred_check
          %p338 = pneg %p165
        $region22: #{attention4d_forward.5} parent=11 // pred_check_branch
          %340 = sbr.rel (%p338) target = $region24
        $region23: #{attention4d_forward.5} parent=11 // pred_region
          _
        $region24: #{attention4d_forward.5} parent=11 // pred_fallthru
          _
        // Predicated region
        $region25: #{attention4d_forward.5} parent=11 // pred_check
          %p341 = pneg %p186
        $region26: #{attention4d_forward.5} parent=11 // pred_check_branch
          %343 = sbr.rel (%p341) target = $region28
        $region27: #{attention4d_forward.5} parent=11 // pred_region
          %345 = vsyncadd [#allocation4], 0
          %s347 = sshll.u32 %s6, 4
          %s348 = int_to_ptr.vmem [resolvable:$true] %s347
          %350 = dma.vmem_to_smem %s348, 64, [#allocation2], [#allocation4]
        $region28: #{attention4d_forward.5} parent=11 // pred_fallthru
          _
        // Predicated region
        $region29: #{attention4d_forward.5} parent=11 // pred_check
          %p351 = pneg %p207
        $region30: #{attention4d_forward.5} parent=11 // pred_check_branch
          %353 = sbr.rel (%p351) target = $region32
        $region31: #{attention4d_forward.5} parent=11 // pred_region
          %355 = vsyncadd [#allocation6], 0
          %s357 = sshll.u32 %s7, 4
          %s358 = int_to_ptr.vmem [resolvable:$true] %s357
          %360 = dma.vmem_to_smem %s358, 16, [#allocation5], [#allocation6]
        $region32: #{attention4d_forward.5} parent=11 // pred_fallthru
          _
        // Predicated region
        $region33: #{attention4d_forward.5} parent=11 // pred_check
          %p361 = pneg %p228
        $region34: #{attention4d_forward.5} parent=11 // pred_check_branch
          %363 = sbr.rel (%p361) target = $region36
        $region35: #{attention4d_forward.5} parent=11 // pred_region
          %365 = vsyncadd [#allocation6], 0
          %s367 = sshll.u32 %s8, 4
          %s368 = int_to_ptr.vmem [resolvable:$true] %s367
          %370 = dma.vmem_to_smem %s368, 64, [#allocation7], [#allocation6]
        $region36: #{attention4d_forward.5} parent=11 // pred_fallthru
          _
        // Predicated region
        $region37: #{attention4d_forward.5} parent=11 // pred_check
          %p371 = pneg %p249
        $region38: #{attention4d_forward.5} parent=11 // pred_check_branch
          %373 = sbr.rel (%p371) target = $region40
        $region39: #{attention4d_forward.5} parent=11 // pred_region
          %375 = vsyncadd [#allocation9], 0
          %s377 = sshll.u32 %s9, 4
          %s378 = int_to_ptr.vmem [resolvable:$true] %s377
          %380 = dma.vmem_to_smem %s378, 16, [#allocation8], [#allocation9]
        $region40: #{attention4d_forward.5} parent=11 // pred_fallthru
          _
        // Predicated region
        $region41: #{attention4d_forward.5} parent=11 // pred_check
          %p381 = pneg %p270
        $region42: #{attention4d_forward.5} parent=11 // pred_check_branch
          %383 = sbr.rel (%p381) target = $region44
        $region43: #{attention4d_forward.5} parent=11 // pred_region
          _
        $region44: #{attention4d_forward.5} parent=11 // pred_fallthru
          _
        // Predicated region
        $region45: #{attention4d_forward.5} parent=11 // pred_check
          %p384 = pneg %p291
        $region46: #{attention4d_forward.5} parent=11 // pred_check_branch
          %386 = sbr.rel (%p384) target = $region48
        $region47: #{attention4d_forward.5} parent=11 // pred_region
          _
        $region48: #{attention4d_forward.5} parent=11 // pred_fallthru
          _
      $region12: #{attention4d_forward.5} parent=5 // pred_fallthru
        _
      %p387 = scmp.lt.s32.totalorder %s24, 2
      // Predicated region
      $region49: #{attention4d_forward.5} parent=5 // pred_check
        %p388 = pneg %p387
      $region50: #{attention4d_forward.5} parent=5 // pred_check_branch
        %390 = sbr.rel (%p388) target = $region52
      $region51: #{attention4d_forward.5} parent=5 // pred_region
        // Predicated region
        $region53: #{attention4d_forward.5} parent=51 // pred_check
          %p391 = pneg %p44
        $region54: #{attention4d_forward.5} parent=51 // pred_check_branch
          %393 = sbr.rel (%p391) target = $region56
        $region55: #{attention4d_forward.5} parent=51 // pred_region
          %p394 = scmp.lt.s32.totalorder %s24, 1
          %s395 = scalar_select %p394, %s24, 1
          %s396 = smul.addr %s395, 2
          %s397 = smul.addr %s396, 8
          %s398 = scalar_lea.vmem %s0, %s397
        $region56: #{attention4d_forward.5} parent=51 // pred_fallthru
          _
        // Predicated region
        $region57: #{attention4d_forward.5} parent=51 // pred_check
          %p399 = pneg %p70
        $region58: #{attention4d_forward.5} parent=51 // pred_check_branch
          %401 = sbr.rel (%p399) target = $region60
        $region59: #{attention4d_forward.5} parent=51 // pred_region
          %p402 = scmp.lt.s32.totalorder %s24, 1
          %s403 = scalar_select %p402, %s24, 1
          %s404 = smul.addr %s403, 2
          %s405 = smul.addr %s404, 8
          %s406 = scalar_lea.vmem %s1, %s405
        $region60: #{attention4d_forward.5} parent=51 // pred_fallthru
          _
        // Predicated region
        $region61: #{attention4d_forward.5} parent=51 // pred_check
          %p407 = pneg %p96
        $region62: #{attention4d_forward.5} parent=51 // pred_check_branch
          %409 = sbr.rel (%p407) target = $region64
        $region63: #{attention4d_forward.5} parent=51 // pred_region
          %p410 = scmp.lt.s32.totalorder %s24, 1
          %s411 = scalar_select %p410, %s24, 1
          %s412 = smul.addr %s411, 2
          %s413 = smul.addr %s412, 8
          %s414 = scalar_lea.vmem %s2, %s413
        $region64: #{attention4d_forward.5} parent=51 // pred_fallthru
          _
      $region52: #{attention4d_forward.5} parent=5 // pred_fallthru
        _
      %p415 = scmp.le.s32.totalorder 1, %s24
      %p416 = scmp.lt.s32.totalorder %s24, 3
      %p417 = pnand %p415, %p416
      %p418 = pneg %p417
      // Predicated region
      $region65: #{attention4d_forward.5} parent=5 // pred_check
        _
      $region66: #{attention4d_forward.5} parent=5 // pred_check_branch
        %420 = sbr.rel (%p417) target = $region68
      $region67: #{attention4d_forward.5} parent=5 // pred_region
        %s421 = ssub.s32 %s24, 1
        // Predicated region
        $region69: #{attention4d_forward.5} parent=67 // pred_check
          %p422 = pneg %p186
        $region70: #{attention4d_forward.5} parent=67 // pred_check_branch
          %424 = sbr.rel (%p422) target = $region72
        $region71: #{attention4d_forward.5} parent=67 // pred_region
          %426 = dma.done [#allocation4], 64
        $region72: #{attention4d_forward.5} parent=67 // pred_fallthru
          _
        // Predicated region
        $region73: #{attention4d_forward.5} parent=67 // pred_check
          %p427 = pneg %p207
        $region74: #{attention4d_forward.5} parent=67 // pred_check_branch
          %429 = sbr.rel (%p427) target = $region76
        $region75: #{attention4d_forward.5} parent=67 // pred_region
          %431 = dma.done [#allocation6], 16
        $region76: #{attention4d_forward.5} parent=67 // pred_fallthru
          _
        // Predicated region
        $region77: #{attention4d_forward.5} parent=67 // pred_check
          %p432 = pneg %p228
        $region78: #{attention4d_forward.5} parent=67 // pred_check_branch
          %434 = sbr.rel (%p432) target = $region80
        $region79: #{attention4d_forward.5} parent=67 // pred_region
          %436 = dma.done [#allocation6], 64
        $region80: #{attention4d_forward.5} parent=67 // pred_fallthru
          _
        // Predicated region
        $region81: #{attention4d_forward.5} parent=67 // pred_check
          %p437 = pneg %p249
        $region82: #{attention4d_forward.5} parent=67 // pred_check_branch
          %439 = sbr.rel (%p437) target = $region84
        $region83: #{attention4d_forward.5} parent=67 // pred_region
          %441 = dma.done [#allocation9], 16
        $region84: #{attention4d_forward.5} parent=67 // pred_fallthru
          _
        %442 = sfence
        %p443 = scmp.lt.s32.totalorder %s29, 1
        %s444 = scalar_select %p443, %s29, 1
        %s445 = smul.addr %s444, 2
        %s446 = smul.addr %s445, 8
        %s447 = scalar_lea.vmem %s0, %s446
        %p448 = pneg %p50
        %p449 = pneg %p47
        %p450 = scmp.lt.s32.totalorder %s29, 1
        %s451 = scalar_select %p450, %s29, 1
        %s452 = smul.addr %s451, 2
        %s453 = smul.addr %s452, 8
        %s454 = scalar_lea.vmem %s1, %s453
        %p455 = pneg %p76
        %p456 = pneg %p73
        %p457 = scmp.lt.s32.totalorder %s29, 1
        %s458 = scalar_select %p457, %s29, 1
        %s459 = smul.addr %s458, 2
        %s460 = smul.addr %s459, 8
        %s461 = scalar_lea.vmem %s2, %s460
        %p462 = pneg %p102
        %p463 = pneg %p99
        %p464 = pneg %p123
        %p465 = pneg %p120
        %p466 = pneg %p144
        %p467 = pneg %p141
        %p468 = pneg %p165
        %p469 = pneg %p162
        %p470 = pneg %p186
        %p471 = pneg %p183
        %p472 = pneg %p207
        %p473 = pneg %p204
        %p474 = pneg %p228
        %p475 = pneg %p225
        %p476 = pneg %p249
        %p477 = pneg %p246
        %p478 = pneg %p270
        %p479 = pneg %p267
        %p480 = pneg %p291
        %p481 = pneg %p288
        %p482 = pneg %p317
        %p483 = pneg %p314
        %s484 = sand.u32 %s304, 1
        %s485 = scalar_lea.sflag [#allocation3], %s484
        %s486 = sand.u32 %s304, 1
        %s487 = smul.addr %s486, 16
        %s488 = scalar_lea.vmem [#allocation10], %s487
        %p489 = scmp.lt.s32.totalorder %s29, 1
        %s490 = scalar_select %p489, %s29, 1
        %s491 = smul.addr %s490, 2
        %s492 = smul.addr %s491, 8
        %s493 = scalar_lea.vmem %s0, %s492
        %p494 = scmp.lt.s32.totalorder %s29, 1
        %s495 = scalar_select %p494, %s29, 1
        %s496 = smul.addr %s495, 2
        %s497 = smul.addr %s496, 8
        %s498 = scalar_lea.vmem %s1, %s497
        %p499 = scmp.lt.s32.totalorder %s29, 1
        %s500 = scalar_select %p499, %s29, 1
        %s501 = smul.addr %s500, 2
        %s502 = smul.addr %s501, 8
        %s503 = scalar_lea.vmem %s2, %s502
        %v504 = vld [vmem:[%s493] sm:$0xff]
        %v505 = vld [vmem:[%s493 + $0x8] sm:$0xff]
        %v506 = vld [vmem:[%s4] sm:$0xff]
        %v507 = vld [vmem:[%s4 + $0x8] sm:$0xff]
        %v508 = vld [vmem:[%s4 + $0x10] sm:$0xff]
        %v509 = vld [vmem:[%s4 + $0x18] sm:$0xff]
        %v510 = vld [vmem:[%s5] sm:$0x1]
        %v512 = vperm.slane %v510, 0
        %vm514 = vcmask 261120
        %v516 = vsel %vm514, %v504, 0
        %v519 = vsel %vm514, %v505, 0
        %521 = vmatpush.msra.mxu0 0.0
        %522 = vmatpush.msra.mxu0 0.0
        %523 = vmatpush.msra.mxu0 0.0
        %524 = vmatpush.msra.mxu0 0.0
        %525 = vmatpush.msra.mxu0 0.0
        %526 = vmatpush.msra.mxu0 0.0
        %527 = vmatpush.msra.mxu0 0.0
        %528 = vmatpush.msra.mxu0 0.0
        %529 = vmatpush.msra.mxu0 0.0
        %530 = vmatpush.msra.mxu0 0.0
        %531 = vmatpush.msra.mxu0 0.0
        %532 = vmatpush.msra.mxu0 0.0
        %533 = vmatpush.msra.mxu0 %v509
        %534 = vmatpush.msra.mxu0 %v508
        %535 = vmatpush.msra.mxu0 %v507
        %536 = vmatpush.msra.mxu0 %v506
        %537 = vmatmul.f32.gmra.mxu0 %v516
        %v538 = vpop.f32.mrf.mxu0
        %v539 = vadd.f32 %v512, %v538
        %540 = vmatmul.f32.gmra.mxu0 %v519
        %v541 = vpop.f32.mrf.mxu0
        %v542 = vadd.f32 %v512, %v541
        %543 = vdwg.mxu0
        %v544 = vld [vmem:[%s498] sm:$0xff]
        %v545 = vld [vmem:[%s498 + $0x8] sm:$0xff]
        %v546 = vld [vmem:[%s503] sm:$0xff]
        %v547 = vld [vmem:[%s503 + $0x8] sm:$0xff]
        %v548 = vld [vmem:[%s3] sm:$0xff]
        %v549 = vld [vmem:[%s3 + $0x8] sm:$0xff]
        %552 = vrot.lane.b32.xlu0 %v539, 96
        %v553 = vpop.permute.xlu0 %552
        %554 = vrot.lane.b32.xlu0 %v542, 96
        %v555 = vpop.permute.xlu0 %554
        %vm556 = vcmask 64512
        %v557 = vsel %vm556, %v539, 0
        %v559 = vsel %vm556, %v542, 0
        %v561 = vsel %vm556, %v553, 0
        %v563 = vsel %vm556, %v555, 0
        %565 = vmatpush.xpose.msra.mxu0 0.0
        %566 = vmatpush.xpose.msra.mxu0 0.0
        %567 = vmatpush.xpose.msra.mxu0 0.0
        %568 = vmatpush.xpose.msra.mxu0 0.0
        %569 = vmatpush.xpose.msra.mxu0 0.0
        %570 = vmatpush.xpose.msra.mxu0 0.0
        %571 = vmatpush.xpose.msra.mxu0 0.0
        %572 = vmatpush.xpose.msra.mxu0 0.0
        %573 = vmatpush.xpose.msra.mxu0 0.0
        %574 = vmatpush.xpose.msra.mxu0 0.0
        %575 = vmatpush.xpose.msra.mxu0 0.0
        %576 = vmatpush.xpose.msra.mxu0 0.0
        %577 = vmatpush.xpose.msra.mxu0 0.0
        %578 = vmatpush.xpose.msra.mxu0 0.0
        %579 = vmatpush.xpose.msra.mxu0 %v563
        %580 = vmatpush.xpose.msra.mxu0 %v561
        %581 = vmatmul.f32.gmra.mxu0 %v557
        %v582 = vpop.f32.mrf.mxu0
        %v583 = vadd.f32 %v548, %v582
        %584 = vmatmul.f32.gmra.mxu0 %v559
        %v585 = vpop.f32.mrf.mxu0
        %v586 = vadd.f32 %v549, %v585
        %587 = vdwg.mxu0
        %s588 = scalar_lea.vmem %s3, 16
        %v589 = vld [vmem:[%s588] sm:$0xff]
        %v590 = vld [vmem:[%s588 + $0x8] sm:$0xff]
        %591 = vrot.lane.b32.xlu0 %v539, 120
        %v592 = vpop.permute.xlu0 %591
        %593 = vrot.lane.b32.xlu0 %v542, 120
        %v594 = vpop.permute.xlu0 %593
        %595 = vrot.lane.b32.xlu0 %v539, 88
        %v596 = vpop.permute.xlu0 %595
        %597 = vrot.lane.b32.xlu0 %v542, 88
        %v598 = vpop.permute.xlu0 %597
        %v599 = vsel %vm556, %v592, 0
        %v601 = vsel %vm556, %v594, 0
        %v603 = vsel %vm556, %v596, 0
        %v605 = vsel %vm556, %v598, 0
        %607 = vmatpush.xpose.msra.mxu0 0.0
        %608 = vmatpush.xpose.msra.mxu0 0.0
        %609 = vmatpush.xpose.msra.mxu0 0.0
        %610 = vmatpush.xpose.msra.mxu0 0.0
        %611 = vmatpush.xpose.msra.mxu0 0.0
        %612 = vmatpush.xpose.msra.mxu0 0.0
        %613 = vmatpush.xpose.msra.mxu0 0.0
        %614 = vmatpush.xpose.msra.mxu0 0.0
        %615 = vmatpush.xpose.msra.mxu0 0.0
        %616 = vmatpush.xpose.msra.mxu0 0.0
        %617 = vmatpush.xpose.msra.mxu0 0.0
        %618 = vmatpush.xpose.msra.mxu0 0.0
        %619 = vmatpush.xpose.msra.mxu0 0.0
        %620 = vmatpush.xpose.msra.mxu0 0.0
        %621 = vmatpush.xpose.msra.mxu0 %v605
        %622 = vmatpush.xpose.msra.mxu0 %v603
        %623 = vmatmul.f32.gmra.mxu0 %v599
        %v624 = vpop.f32.mrf.mxu0
        %v625 = vadd.f32 %v589, %v624
        %626 = vmatmul.f32.gmra.mxu0 %v601
        %v627 = vpop.f32.mrf.mxu0
        %v628 = vadd.f32 %v590, %v627
        %629 = vdwg.mxu0
        %s630 = scalar_lea.vmem %s3, 32
        %v631 = vld [vmem:[%s630] sm:$0xff]
        %v632 = vld [vmem:[%s630 + $0x8] sm:$0xff]
        %633 = vrot.lane.b32.xlu0 %v539, 112
        %v634 = vpop.permute.xlu0 %633
        %635 = vrot.lane.b32.xlu0 %v542, 112
        %v636 = vpop.permute.xlu0 %635
        %637 = vrot.lane.b32.xlu0 %v539, 80
        %v638 = vpop.permute.xlu0 %637
        %639 = vrot.lane.b32.xlu0 %v542, 80
        %v640 = vpop.permute.xlu0 %639
        %v641 = vsel %vm556, %v634, 0
        %v643 = vsel %vm556, %v636, 0
        %v645 = vsel %vm556, %v638, 0
        %v647 = vsel %vm556, %v640, 0
        %649 = vmatpush.xpose.msra.mxu0 0.0
        %650 = vmatpush.xpose.msra.mxu0 0.0
        %651 = vmatpush.xpose.msra.mxu0 0.0
        %652 = vmatpush.xpose.msra.mxu0 0.0
        %653 = vmatpush.xpose.msra.mxu0 0.0
        %654 = vmatpush.xpose.msra.mxu0 0.0
        %655 = vmatpush.xpose.msra.mxu0 0.0
        %656 = vmatpush.xpose.msra.mxu0 0.0
        %657 = vmatpush.xpose.msra.mxu0 0.0
        %658 = vmatpush.xpose.msra.mxu0 0.0
        %659 = vmatpush.xpose.msra.mxu0 0.0
        %660 = vmatpush.xpose.msra.mxu0 0.0
        %661 = vmatpush.xpose.msra.mxu0 0.0
        %662 = vmatpush.xpose.msra.mxu0 0.0
        %663 = vmatpush.xpose.msra.mxu0 %v647
        %664 = vmatpush.xpose.msra.mxu0 %v645
        %665 = vmatmul.f32.gmra.mxu0 %v641
        %v666 = vpop.f32.mrf.mxu0
        %v667 = vadd.f32 %v631, %v666
        %668 = vmatmul.f32.gmra.mxu0 %v643
        %v669 = vpop.f32.mrf.mxu0
        %v670 = vadd.f32 %v632, %v669
        %671 = vdwg.mxu0
        %s672 = scalar_lea.vmem %s3, 48
        %v673 = vld [vmem:[%s672] sm:$0xff]
        %v674 = vld [vmem:[%s672 + $0x8] sm:$0xff]
        %675 = vrot.lane.b32.xlu0 %v539, 104
        %v676 = vpop.permute.xlu0 %675
        %677 = vrot.lane.b32.xlu0 %v542, 104
        %v678 = vpop.permute.xlu0 %677
        %679 = vrot.lane.b32.xlu0 %v539, 72
        %v680 = vpop.permute.xlu0 %679
        %681 = vrot.lane.b32.xlu0 %v542, 72
        %v682 = vpop.permute.xlu0 %681
        %v683 = vsel %vm556, %v676, 0
        %v685 = vsel %vm556, %v678, 0
        %v687 = vsel %vm556, %v680, 0
        %v689 = vsel %vm556, %v682, 0
        %691 = vmatpush.xpose.msra.mxu0 0.0
        %692 = vmatpush.xpose.msra.mxu0 0.0
        %693 = vmatpush.xpose.msra.mxu0 0.0
        %694 = vmatpush.xpose.msra.mxu0 0.0
        %695 = vmatpush.xpose.msra.mxu0 0.0
        %696 = vmatpush.xpose.msra.mxu0 0.0
        %697 = vmatpush.xpose.msra.mxu0 0.0
        %698 = vmatpush.xpose.msra.mxu0 0.0
        %699 = vmatpush.xpose.msra.mxu0 0.0
        %700 = vmatpush.xpose.msra.mxu0 0.0
        %701 = vmatpush.xpose.msra.mxu0 0.0
        %702 = vmatpush.xpose.msra.mxu0 0.0
        %703 = vmatpush.xpose.msra.mxu0 0.0
        %704 = vmatpush.xpose.msra.mxu0 0.0
        %705 = vmatpush.xpose.msra.mxu0 %v689
        %706 = vmatpush.xpose.msra.mxu0 %v687
        %707 = vmatmul.f32.gmra.mxu0 %v683
        %v708 = vpop.f32.mrf.mxu0
        %v709 = vadd.f32 %v673, %v708
        %710 = vmatmul.f32.gmra.mxu0 %v685
        %v711 = vpop.f32.mrf.mxu0
        %v712 = vadd.f32 %v674, %v711
        %713 = vdwg.mxu0
        %s714 = sld [smem:[#allocation5]]
        %v715 = vstv %s714
        %s716 = sld [smem:[#allocation2]]
        %v717 = vstv %s716
        %v718 = vmul.f32 %v717, %v583
        %v719 = vmul.f32 %v717, %v586
        %v720 = vadd.f32 %v715, %v718
        %v721 = vadd.f32 %v715, %v719
        %s722 = sld [smem:[#allocation2 + $0x1]]
        %v723 = vstv %s722
        %v724 = vmul.f32 %v723, %v625
        %v725 = vmul.f32 %v723, %v628
        %v726 = vadd.f32 %v720, %v724
        %v727 = vadd.f32 %v721, %v725
        %s728 = sld [smem:[#allocation2 + $0x2]]
        %v729 = vstv %s728
        %v730 = vmul.f32 %v729, %v667
        %v731 = vmul.f32 %v729, %v670
        %v732 = vadd.f32 %v726, %v730
        %v733 = vadd.f32 %v727, %v731
        %s734 = sld [smem:[#allocation2 + $0x3]]
        %v735 = vstv %s734
        %v736 = vmul.f32 %v735, %v709
        %v737 = vmul.f32 %v735, %v712
        %v738 = vadd.f32 %v732, %v736
        %v739 = vadd.f32 %v733, %v737
        %s740 = sld [smem:[#allocation5 + $0x1]]
        %v741 = vstv %s740
        %s742 = sld [smem:[#allocation2 + $0x80]]
        %v743 = vstv %s742
        %v744 = vmul.f32 %v743, %v583
        %v745 = vmul.f32 %v743, %v586
        %v746 = vadd.f32 %v741, %v744
        %v747 = vadd.f32 %v741, %v745
        %s748 = sld [smem:[#allocation2 + $0x81]]
        %v749 = vstv %s748
        %v750 = vmul.f32 %v749, %v625
        %v751 = vmul.f32 %v749, %v628
        %v752 = vadd.f32 %v746, %v750
        %v753 = vadd.f32 %v747, %v751
        %s754 = sld [smem:[#allocation2 + $0x82]]
        %v755 = vstv %s754
        %v756 = vmul.f32 %v755, %v667
        %v757 = vmul.f32 %v755, %v670
        %v758 = vadd.f32 %v752, %v756
        %v759 = vadd.f32 %v753, %v757
        %s760 = sld [smem:[#allocation2 + $0x83]]
        %v761 = vstv %s760
        %v762 = vmul.f32 %v761, %v709
        %v763 = vmul.f32 %v761, %v712
        %v764 = vadd.f32 %v758, %v762
        %v765 = vadd.f32 %v759, %v763
        %s766 = sld [smem:[#allocation5 + $0x2]]
        %v767 = vstv %s766
        %s768 = sld [smem:[#allocation2 + $0x100]]
        %v769 = vstv %s768
        %v770 = vmul.f32 %v769, %v583
        %v771 = vmul.f32 %v769, %v586
        %v772 = vadd.f32 %v767, %v770
        %v773 = vadd.f32 %v767, %v771
        %s774 = sld [smem:[#allocation2 + $0x101]]
        %v775 = vstv %s774
        %v776 = vmul.f32 %v775, %v625
        %v777 = vmul.f32 %v775, %v628
        %v778 = vadd.f32 %v772, %v776
        %v779 = vadd.f32 %v773, %v777
        %s780 = sld [smem:[#allocation2 + $0x102]]
        %v781 = vstv %s780
        %v782 = vmul.f32 %v781, %v667
        %v783 = vmul.f32 %v781, %v670
        %v784 = vadd.f32 %v778, %v782
        %v785 = vadd.f32 %v779, %v783
        %s786 = sld [smem:[#allocation2 + $0x103]]
        %v787 = vstv %s786
        %v788 = vmul.f32 %v787, %v709
        %v789 = vmul.f32 %v787, %v712
        %v790 = vadd.f32 %v784, %v788
        %v791 = vadd.f32 %v785, %v789
        %s792 = sld [smem:[#allocation5 + $0x3]]
        %v793 = vstv %s792
        %s794 = sld [smem:[#allocation2 + $0x180]]
        %v795 = vstv %s794
        %v796 = vmul.f32 %v795, %v583
        %v797 = vmul.f32 %v795, %v586
        %v798 = vadd.f32 %v793, %v796
        %v799 = vadd.f32 %v793, %v797
        %s800 = sld [smem:[#allocation2 + $0x181]]
        %v801 = vstv %s800
        %v802 = vmul.f32 %v801, %v625
        %v803 = vmul.f32 %v801, %v628
        %v804 = vadd.f32 %v798, %v802
        %v805 = vadd.f32 %v799, %v803
        %s806 = sld [smem:[#allocation2 + $0x182]]
        %v807 = vstv %s806
        %v808 = vmul.f32 %v807, %v667
        %v809 = vmul.f32 %v807, %v670
        %v810 = vadd.f32 %v804, %v808
        %v811 = vadd.f32 %v805, %v809
        %s812 = sld [smem:[#allocation2 + $0x183]]
        %v813 = vstv %s812
        %v814 = vmul.f32 %v813, %v709
        %v815 = vmul.f32 %v813, %v712
        %v816 = vadd.f32 %v810, %v814
        %v817 = vadd.f32 %v811, %v815
        %vm818 = vcmask 130048
        %v819 = vsel %vm818, %v738, -inf
        %820 = vmax.xlane.f32.xlu0 %v819
        %v821 = vpop.xlane.xlu0 %820
        %v822 = vsel %vm818, %v739, -inf
        %823 = vmax.xlane.f32.xlu0 %v822
        %v824 = vpop.xlane.xlu0 %823
        %v825 = vsub.f32 %v738, %v821
        %v826 = vsub.f32 %v739, %v824
        %v827 = vmul.f32 %v825, 1.442695
        %v828 = vpow.pop %v827
        %v829 = vmul.f32 %v826, 1.442695
        %v830 = vpow.pop %v829
        %v831 = vsel %vm818, %v828, 0.0
        %832 = vadd.xlane.f32.xlu0 %v831
        %v833 = vpop.xlane.xlu0 %832
        %v834 = vsel %vm818, %v830, 0.0
        %835 = vadd.xlane.f32.xlu0 %v834
        %v836 = vpop.xlane.xlu0 %835
        %v837 = vrcp.pop %v833
        %v838 = vrcp.pop %v836
        %v839 = vmul.f32 %v828, %v837
        %v840 = vmul.f32 %v830, %v838
        %v841 = vsel %vm818, %v764, -inf
        %842 = vmax.xlane.f32.xlu0 %v841
        %v843 = vpop.xlane.xlu0 %842
        %v844 = vsel %vm818, %v765, -inf
        %845 = vmax.xlane.f32.xlu0 %v844
        %v846 = vpop.xlane.xlu0 %845
        %v847 = vsub.f32 %v764, %v843
        %v848 = vsub.f32 %v765, %v846
        %v849 = vmul.f32 %v847, 1.442695
        %v850 = vpow.pop %v849
        %v851 = vmul.f32 %v848, 1.442695
        %v852 = vpow.pop %v851
        %v853 = vsel %vm818, %v850, 0.0
        %854 = vadd.xlane.f32.xlu0 %v853
        %v855 = vpop.xlane.xlu0 %854
        %v856 = vsel %vm818, %v852, 0.0
        %857 = vadd.xlane.f32.xlu0 %v856
        %v858 = vpop.xlane.xlu0 %857
        %v859 = vrcp.pop %v855
        %v860 = vrcp.pop %v858
        %v861 = vmul.f32 %v850, %v859
        %v862 = vmul.f32 %v852, %v860
        %v863 = vsel %vm818, %v790, -inf
        %864 = vmax.xlane.f32.xlu0 %v863
        %v865 = vpop.xlane.xlu0 %864
        %v866 = vsel %vm818, %v791, -inf
        %867 = vmax.xlane.f32.xlu0 %v866
        %v868 = vpop.xlane.xlu0 %867
        %v869 = vsub.f32 %v790, %v865
        %v870 = vsub.f32 %v791, %v868
        %v871 = vmul.f32 %v869, 1.442695
        %v872 = vpow.pop %v871
        %v873 = vmul.f32 %v870, 1.442695
        %v874 = vpow.pop %v873
        %v875 = vsel %vm818, %v872, 0.0
        %876 = vadd.xlane.f32.xlu0 %v875
        %v877 = vpop.xlane.xlu0 %876
        %v878 = vsel %vm818, %v874, 0.0
        %879 = vadd.xlane.f32.xlu0 %v878
        %v880 = vpop.xlane.xlu0 %879
        %v881 = vrcp.pop %v877
        %v882 = vrcp.pop %v880
        %v883 = vmul.f32 %v872, %v881
        %v884 = vmul.f32 %v874, %v882
        %v885 = vsel %vm818, %v816, -inf
        %886 = vmax.xlane.f32.xlu0 %v885
        %v887 = vpop.xlane.xlu0 %886
        %v888 = vsel %vm818, %v817, -inf
        %889 = vmax.xlane.f32.xlu0 %v888
        %v890 = vpop.xlane.xlu0 %889
        %v891 = vsub.f32 %v816, %v887
        %v892 = vsub.f32 %v817, %v890
        %v893 = vmul.f32 %v891, 1.442695
        %v894 = vpow.pop %v893
        %v895 = vmul.f32 %v892, 1.442695
        %v896 = vpow.pop %v895
        %v897 = vsel %vm818, %v894, 0.0
        %898 = vadd.xlane.f32.xlu0 %v897
        %v899 = vpop.xlane.xlu0 %898
        %v900 = vsel %vm818, %v896, 0.0
        %901 = vadd.xlane.f32.xlu0 %v900
        %v902 = vpop.xlane.xlu0 %901
        %v903 = vrcp.pop %v899
        %v904 = vrcp.pop %v902
        %v905 = vmul.f32 %v894, %v903
        %v906 = vmul.f32 %v896, %v904
        %v907 = vld [vmem:[%s11] sm:$0x1]
        %v909 = vperm.slane %v907, 0
        %v911 = vadd.f32 %v909, 0.0
        %s912 = sld [smem:[#allocation8]]
        %v913 = vstv %s912
        %s914 = sld [smem:[#allocation7]]
        %v915 = vstv %s914
        %v916 = vmul.f32 %v915, %v839
        %v917 = vmul.f32 %v915, %v840
        %v918 = vadd.f32 %v913, %v916
        %v919 = vadd.f32 %v913, %v917
        %s920 = sld [smem:[#allocation7 + $0x1]]
        %v921 = vstv %s920
        %v922 = vmul.f32 %v921, %v861
        %v923 = vmul.f32 %v921, %v862
        %v924 = vadd.f32 %v918, %v922
        %v925 = vadd.f32 %v919, %v923
        %s926 = sld [smem:[#allocation7 + $0x2]]
        %v927 = vstv %s926
        %v928 = vmul.f32 %v927, %v883
        %v929 = vmul.f32 %v927, %v884
        %v930 = vadd.f32 %v924, %v928
        %v931 = vadd.f32 %v925, %v929
        %s932 = sld [smem:[#allocation7 + $0x3]]
        %v933 = vstv %s932
        %v934 = vmul.f32 %v933, %v905
        %v935 = vmul.f32 %v933, %v906
        %v936 = vadd.f32 %v930, %v934
        %v937 = vadd.f32 %v931, %v935
        %v939 = vsel %vm818, %v936, 0
        %v942 = vsel %vm818, %v937, 0
        %944 = vmatpush.msra.mxu0 0.0
        %945 = vmatpush.msra.mxu0 0.0
        %946 = vmatpush.msra.mxu0 0.0
        %947 = vmatpush.msra.mxu0 0.0
        %948 = vmatpush.msra.mxu0 0.0
        %949 = vmatpush.msra.mxu0 0.0
        %950 = vmatpush.msra.mxu0 0.0
        %951 = vmatpush.msra.mxu0 0.0
        %952 = vmatpush.msra.mxu0 0.0
        %953 = vmatpush.msra.mxu0 0.0
        %954 = vmatpush.msra.mxu0 0.0
        %955 = vmatpush.msra.mxu0 0.0
        %956 = vmatpush.msra.mxu0 0.0
        %957 = vmatpush.msra.mxu0 0.0
        %958 = vmatpush.msra.mxu0 %v545
        %959 = vmatpush.msra.mxu0 %v544
        %960 = vmatmul.f32.gmra.mxu0 %v939
        %v961 = vpop.f32.mrf.mxu0
        %v962 = vadd.f32 %v546, %v961
        %963 = vmatmul.f32.gmra.mxu0 %v942
        %v964 = vpop.f32.mrf.mxu0
        %v965 = vadd.f32 %v547, %v964
        %966 = vdwg.mxu0
        %v967 = vmax.f32 %v962, 0.0
        %v968 = vmax.f32 %v965, 0.0
        %v969 = vld [vmem:[%s10] sm:$0xff]
        %v970 = vld [vmem:[%s10 + $0x8] sm:$0xff]
        %v972 = vsel %vm818, %v967, 0
        %v975 = vsel %vm818, %v968, 0
        %977 = vmatpush.msra.mxu0 0.0
        %978 = vmatpush.msra.mxu0 0.0
        %979 = vmatpush.msra.mxu0 0.0
        %980 = vmatpush.msra.mxu0 0.0
        %981 = vmatpush.msra.mxu0 0.0
        %982 = vmatpush.msra.mxu0 0.0
        %983 = vmatpush.msra.mxu0 0.0
        %984 = vmatpush.msra.mxu0 0.0
        %985 = vmatpush.msra.mxu0 0.0
        %986 = vmatpush.msra.mxu0 0.0
        %987 = vmatpush.msra.mxu0 0.0
        %988 = vmatpush.msra.mxu0 0.0
        %989 = vmatpush.msra.mxu0 0.0
        %990 = vmatpush.msra.mxu0 0.0
        %991 = vmatpush.msra.mxu0 %v970
        %992 = vmatpush.msra.mxu0 %v969
        %993 = vmatmul.f32.gmra.mxu0 %v972
        %v994 = vpop.f32.mrf.mxu0
        %v995 = vadd.f32 0.0, %v994
        %996 = vmatmul.f32.gmra.mxu0 %v975
        %v997 = vpop.f32.mrf.mxu0
        %v998 = vadd.f32 0.0, %v997
        %999 = vdwg.mxu0
        %v1000 = vadd.f32 %v911, %v995
        %v1001 = vadd.f32 %v911, %v998
        %s1002 = sld [smem:[#allocation8 + $0x1]]
        %v1003 = vstv %s1002
        %s1004 = sld [smem:[#allocation7 + $0x80]]
        %v1005 = vstv %s1004
        %v1006 = vmul.f32 %v1005, %v839
        %v1007 = vmul.f32 %v1005, %v840
        %v1008 = vadd.f32 %v1003, %v1006
        %v1009 = vadd.f32 %v1003, %v1007
        %s1010 = sld [smem:[#allocation7 + $0x81]]
        %v1011 = vstv %s1010
        %v1012 = vmul.f32 %v1011, %v861
        %v1013 = vmul.f32 %v1011, %v862
        %v1014 = vadd.f32 %v1008, %v1012
        %v1015 = vadd.f32 %v1009, %v1013
        %s1016 = sld [smem:[#allocation7 + $0x82]]
        %v1017 = vstv %s1016
        %v1018 = vmul.f32 %v1017, %v883
        %v1019 = vmul.f32 %v1017, %v884
        %v1020 = vadd.f32 %v1014, %v1018
        %v1021 = vadd.f32 %v1015, %v1019
        %s1022 = sld [smem:[#allocation7 + $0x83]]
        %v1023 = vstv %s1022
        %v1024 = vmul.f32 %v1023, %v905
        %v1025 = vmul.f32 %v1023, %v906
        %v1026 = vadd.f32 %v1020, %v1024
        %v1027 = vadd.f32 %v1021, %v1025
        %1030 = vrot.lane.b32.xlu0 %v544, 112
        %v1031 = vpop.permute.xlu0 %1030
        %1032 = vrot.lane.b32.xlu0 %v545, 112
        %v1033 = vpop.permute.xlu0 %1032
        %1038 = vrot.lane.b32.xlu0 %v546, 112
        %v1039 = vpop.permute.xlu0 %1038
        %1040 = vrot.lane.b32.xlu0 %v547, 112
        %v1041 = vpop.permute.xlu0 %1040
        %v1045 = vsel %vm818, %v1026, 0
        %v1048 = vsel %vm818, %v1027, 0
        %1050 = vmatpush.msra.mxu0 0.0
        %1051 = vmatpush.msra.mxu0 0.0
        %1052 = vmatpush.msra.mxu0 0.0
        %1053 = vmatpush.msra.mxu0 0.0
        %1054 = vmatpush.msra.mxu0 0.0
        %1055 = vmatpush.msra.mxu0 0.0
        %1056 = vmatpush.msra.mxu0 0.0
        %1057 = vmatpush.msra.mxu0 0.0
        %1058 = vmatpush.msra.mxu0 0.0
        %1059 = vmatpush.msra.mxu0 0.0
        %1060 = vmatpush.msra.mxu0 0.0
        %1061 = vmatpush.msra.mxu0 0.0
        %1062 = vmatpush.msra.mxu0 0.0
        %1063 = vmatpush.msra.mxu0 0.0
        %1064 = vmatpush.msra.mxu0 %v1033
        %1065 = vmatpush.msra.mxu0 %v1031
        %1066 = vmatmul.f32.gmra.mxu0 %v1045
        %v1067 = vpop.f32.mrf.mxu0
        %v1068 = vadd.f32 %v1039, %v1067
        %1069 = vmatmul.f32.gmra.mxu0 %v1048
        %v1070 = vpop.f32.mrf.mxu0
        %v1071 = vadd.f32 %v1041, %v1070
        %1072 = vdwg.mxu0
        %v1073 = vmax.f32 %v1068, 0.0
        %v1074 = vmax.f32 %v1071, 0.0
        %s1075 = scalar_lea.vmem %s10, 16
        %v1076 = vld [vmem:[%s1075] sm:$0xff]
        %v1077 = vld [vmem:[%s1075 + $0x8] sm:$0xff]
        %v1079 = vsel %vm818, %v1073, 0
        %v1082 = vsel %vm818, %v1074, 0
        %1084 = vmatpush.msra.mxu0 0.0
        %1085 = vmatpush.msra.mxu0 0.0
        %1086 = vmatpush.msra.mxu0 0.0
        %1087 = vmatpush.msra.mxu0 0.0
        %1088 = vmatpush.msra.mxu0 0.0
        %1089 = vmatpush.msra.mxu0 0.0
        %1090 = vmatpush.msra.mxu0 0.0
        %1091 = vmatpush.msra.mxu0 0.0
        %1092 = vmatpush.msra.mxu0 0.0
        %1093 = vmatpush.msra.mxu0 0.0
        %1094 = vmatpush.msra.mxu0 0.0
        %1095 = vmatpush.msra.mxu0 0.0
        %1096 = vmatpush.msra.mxu0 0.0
        %1097 = vmatpush.msra.mxu0 0.0
        %1098 = vmatpush.msra.mxu0 %v1077
        %1099 = vmatpush.msra.mxu0 %v1076
        %1100 = vmatmul.f32.gmra.mxu0 %v1079
        %v1101 = vpop.f32.mrf.mxu0
        %v1102 = vadd.f32 0.0, %v1101
        %1103 = vmatmul.f32.gmra.mxu0 %v1082
        %v1104 = vpop.f32.mrf.mxu0
        %v1105 = vadd.f32 0.0, %v1104
        %1106 = vdwg.mxu0
        %v1107 = vadd.f32 %v1000, %v1102
        %v1108 = vadd.f32 %v1001, %v1105
        %s1109 = sld [smem:[#allocation8 + $0x2]]
        %v1110 = vstv %s1109
        %s1111 = sld [smem:[#allocation7 + $0x100]]
        %v1112 = vstv %s1111
        %v1113 = vmul.f32 %v1112, %v839
        %v1114 = vmul.f32 %v1112, %v840
        %v1115 = vadd.f32 %v1110, %v1113
        %v1116 = vadd.f32 %v1110, %v1114
        %s1117 = sld [smem:[#allocation7 + $0x101]]
        %v1118 = vstv %s1117
        %v1119 = vmul.f32 %v1118, %v861
        %v1120 = vmul.f32 %v1118, %v862
        %v1121 = vadd.f32 %v1115, %v1119
        %v1122 = vadd.f32 %v1116, %v1120
        %s1123 = sld [smem:[#allocation7 + $0x102]]
        %v1124 = vstv %s1123
        %v1125 = vmul.f32 %v1124, %v883
        %v1126 = vmul.f32 %v1124, %v884
        %v1127 = vadd.f32 %v1121, %v1125
        %v1128 = vadd.f32 %v1122, %v1126
        %s1129 = sld [smem:[#allocation7 + $0x103]]
        %v1130 = vstv %s1129
        %v1131 = vmul.f32 %v1130, %v905
        %v1132 = vmul.f32 %v1130, %v906
        %v1133 = vadd.f32 %v1127, %v1131
        %v1134 = vadd.f32 %v1128, %v1132
        %1135 = vrot.lane.b32.xlu0 %v544, 96
        %v1136 = vpop.permute.xlu0 %1135
        %1137 = vrot.lane.b32.xlu0 %v545, 96
        %v1138 = vpop.permute.xlu0 %1137
        %1141 = vrot.lane.b32.xlu0 %v546, 96
        %v1142 = vpop.permute.xlu0 %1141
        %1143 = vrot.lane.b32.xlu0 %v547, 96
        %v1144 = vpop.permute.xlu0 %1143
        %v1148 = vsel %vm818, %v1133, 0
        %v1151 = vsel %vm818, %v1134, 0
        %1153 = vmatpush.msra.mxu0 0.0
        %1154 = vmatpush.msra.mxu0 0.0
        %1155 = vmatpush.msra.mxu0 0.0
        %1156 = vmatpush.msra.mxu0 0.0
        %1157 = vmatpush.msra.mxu0 0.0
        %1158 = vmatpush.msra.mxu0 0.0
        %1159 = vmatpush.msra.mxu0 0.0
        %1160 = vmatpush.msra.mxu0 0.0
        %1161 = vmatpush.msra.mxu0 0.0
        %1162 = vmatpush.msra.mxu0 0.0
        %1163 = vmatpush.msra.mxu0 0.0
        %1164 = vmatpush.msra.mxu0 0.0
        %1165 = vmatpush.msra.mxu0 0.0
        %1166 = vmatpush.msra.mxu0 0.0
        %1167 = vmatpush.msra.mxu0 %v1138
        %1168 = vmatpush.msra.mxu0 %v1136
        %1169 = vmatmul.f32.gmra.mxu0 %v1148
        %v1170 = vpop.f32.mrf.mxu0
        %v1171 = vadd.f32 %v1142, %v1170
        %1172 = vmatmul.f32.gmra.mxu0 %v1151
        %v1173 = vpop.f32.mrf.mxu0
        %v1174 = vadd.f32 %v1144, %v1173
        %1175 = vdwg.mxu0
        %v1176 = vmax.f32 %v1171, 0.0
        %v1177 = vmax.f32 %v1174, 0.0
        %s1178 = scalar_lea.vmem %s10, 32
        %v1179 = vld [vmem:[%s1178] sm:$0xff]
        %v1180 = vld [vmem:[%s1178 + $0x8] sm:$0xff]
        %v1182 = vsel %vm818, %v1176, 0
        %v1185 = vsel %vm818, %v1177, 0
        %1187 = vmatpush.msra.mxu0 0.0
        %1188 = vmatpush.msra.mxu0 0.0
        %1189 = vmatpush.msra.mxu0 0.0
        %1190 = vmatpush.msra.mxu0 0.0
        %1191 = vmatpush.msra.mxu0 0.0
        %1192 = vmatpush.msra.mxu0 0.0
        %1193 = vmatpush.msra.mxu0 0.0
        %1194 = vmatpush.msra.mxu0 0.0
        %1195 = vmatpush.msra.mxu0 0.0
        %1196 = vmatpush.msra.mxu0 0.0
        %1197 = vmatpush.msra.mxu0 0.0
        %1198 = vmatpush.msra.mxu0 0.0
        %1199 = vmatpush.msra.mxu0 0.0
        %1200 = vmatpush.msra.mxu0 0.0
        %1201 = vmatpush.msra.mxu0 %v1180
        %1202 = vmatpush.msra.mxu0 %v1179
        %1203 = vmatmul.f32.gmra.mxu0 %v1182
        %v1204 = vpop.f32.mrf.mxu0
        %v1205 = vadd.f32 0.0, %v1204
        %1206 = vmatmul.f32.gmra.mxu0 %v1185
        %v1207 = vpop.f32.mrf.mxu0
        %v1208 = vadd.f32 0.0, %v1207
        %1209 = vdwg.mxu0
        %v1210 = vadd.f32 %v1107, %v1205
        %v1211 = vadd.f32 %v1108, %v1208
        %s1212 = sld [smem:[#allocation8 + $0x3]]
        %v1213 = vstv %s1212
        %s1214 = sld [smem:[#allocation7 + $0x180]]
        %v1215 = vstv %s1214
        %v1216 = vmul.f32 %v1215, %v839
        %v1217 = vmul.f32 %v1215, %v840
        %v1218 = vadd.f32 %v1213, %v1216
        %v1219 = vadd.f32 %v1213, %v1217
        %s1220 = sld [smem:[#allocation7 + $0x181]]
        %v1221 = vstv %s1220
        %v1222 = vmul.f32 %v1221, %v861
        %v1223 = vmul.f32 %v1221, %v862
        %v1224 = vadd.f32 %v1218, %v1222
        %v1225 = vadd.f32 %v1219, %v1223
        %s1226 = sld [smem:[#allocation7 + $0x182]]
        %v1227 = vstv %s1226
        %v1228 = vmul.f32 %v1227, %v883
        %v1229 = vmul.f32 %v1227, %v884
        %v1230 = vadd.f32 %v1224, %v1228
        %v1231 = vadd.f32 %v1225, %v1229
        %s1232 = sld [smem:[#allocation7 + $0x183]]
        %v1233 = vstv %s1232
        %v1234 = vmul.f32 %v1233, %v905
        %v1235 = vmul.f32 %v1233, %v906
        %v1236 = vadd.f32 %v1230, %v1234
        %v1237 = vadd.f32 %v1231, %v1235
        %1238 = vrot.lane.b32.xlu0 %v544, 80
        %v1239 = vpop.permute.xlu0 %1238
        %1240 = vrot.lane.b32.xlu0 %v545, 80
        %v1241 = vpop.permute.xlu0 %1240
        %1244 = vrot.lane.b32.xlu0 %v546, 80
        %v1245 = vpop.permute.xlu0 %1244
        %1246 = vrot.lane.b32.xlu0 %v547, 80
        %v1247 = vpop.permute.xlu0 %1246
        %v1251 = vsel %vm818, %v1236, 0
        %v1254 = vsel %vm818, %v1237, 0
        %1256 = vmatpush.msra.mxu0 0.0
        %1257 = vmatpush.msra.mxu0 0.0
        %1258 = vmatpush.msra.mxu0 0.0
        %1259 = vmatpush.msra.mxu0 0.0
        %1260 = vmatpush.msra.mxu0 0.0
        %1261 = vmatpush.msra.mxu0 0.0
        %1262 = vmatpush.msra.mxu0 0.0
        %1263 = vmatpush.msra.mxu0 0.0
        %1264 = vmatpush.msra.mxu0 0.0
        %1265 = vmatpush.msra.mxu0 0.0
        %1266 = vmatpush.msra.mxu0 0.0
        %1267 = vmatpush.msra.mxu0 0.0
        %1268 = vmatpush.msra.mxu0 0.0
        %1269 = vmatpush.msra.mxu0 0.0
        %1270 = vmatpush.msra.mxu0 %v1241
        %1271 = vmatpush.msra.mxu0 %v1239
        %1272 = vmatmul.f32.gmra.mxu0 %v1251
        %v1273 = vpop.f32.mrf.mxu0
        %v1274 = vadd.f32 %v1245, %v1273
        %1275 = vmatmul.f32.gmra.mxu0 %v1254
        %v1276 = vpop.f32.mrf.mxu0
        %v1277 = vadd.f32 %v1247, %v1276
        %1278 = vdwg.mxu0
        %v1279 = vmax.f32 %v1274, 0.0
        %v1280 = vmax.f32 %v1277, 0.0
        %s1281 = scalar_lea.vmem %s10, 48
        %v1282 = vld [vmem:[%s1281] sm:$0xff]
        %v1283 = vld [vmem:[%s1281 + $0x8] sm:$0xff]
        %v1285 = vsel %vm818, %v1279, 0
        %v1288 = vsel %vm818, %v1280, 0
        %1290 = vmatpush.msra.mxu0 0.0
        %1291 = vmatpush.msra.mxu0 0.0
        %1292 = vmatpush.msra.mxu0 0.0
        %1293 = vmatpush.msra.mxu0 0.0
        %1294 = vmatpush.msra.mxu0 0.0
        %1295 = vmatpush.msra.mxu0 0.0
        %1296 = vmatpush.msra.mxu0 0.0
        %1297 = vmatpush.msra.mxu0 0.0
        %1298 = vmatpush.msra.mxu0 0.0
        %1299 = vmatpush.msra.mxu0 0.0
        %1300 = vmatpush.msra.mxu0 0.0
        %1301 = vmatpush.msra.mxu0 0.0
        %1302 = vmatpush.msra.mxu0 0.0
        %1303 = vmatpush.msra.mxu0 0.0
        %1304 = vmatpush.msra.mxu0 %v1283
        %1305 = vmatpush.msra.mxu0 %v1282
        %1306 = vmatmul.f32.gmra.mxu0 %v1285
        %v1307 = vpop.f32.mrf.mxu0
        %v1308 = vadd.f32 0.0, %v1307
        %1309 = vmatmul.f32.gmra.mxu0 %v1288
        %v1310 = vpop.f32.mrf.mxu0
        %v1311 = vadd.f32 0.0, %v1310
        %1312 = vdwg.mxu0
        %v1313 = vadd.f32 %v1210, %v1308
        %v1314 = vadd.f32 %v1211, %v1311
        %1315 = vst.msk [vmem:[%s488] sm:$0xff] %vm514, %v1313
        %1316 = vst.msk [vmem:[%s488 + $0x8] sm:$0xff] %vm514, %v1314
        %s1317 = sand.u32 %s304, 1
        %s1318 = scalar_lea.sflag [#allocation3], %s1317
        %s1319 = sand.u32 %s304, 1
        %s1320 = smul.addr %s1319, 16
        %s1321 = scalar_lea.vmem [#allocation10], %s1320
        // Predicated region
        $region85: #{attention4d_forward.5} parent=67 // pred_check
          %p1322 = pneg %p314
        $region86: #{attention4d_forward.5} parent=67 // pred_check_branch
          %1324 = sbr.rel (%p1322) target = $region88
        $region87: #{attention4d_forward.5} parent=67 // pred_region
          %1326 = vsyncadd %s1318, 0
          %s1327 = smul.addr %s29, 2
          %s1328 = smul.addr %s1327, 8
          %s1329 = scalar_lea.hbm %s12, %s1328
          %s1330 = sshll.u32 %s1321, 4
          %s1331 = int_to_ptr.vmem [resolvable:$true] %s1330
          %s1332 = sshll.u32 %s1329, 4
          %s1333 = int_to_ptr.hbm [resolvable:$true] %s1332
          %1338 = dma.vmem_to_hbm [thread:$0]  %s1331, 256, %s1333, %s1318, 128, 128, 8
        $region88: #{attention4d_forward.5} parent=67 // pred_fallthru
          _
      $region68: #{attention4d_forward.5} parent=5 // pred_fallthru
        _
      %p1339 = scmp.le.s32.totalorder 2, %s24
      // Predicated region
      $region89: #{attention4d_forward.5} parent=5 // pred_check
        %p1340 = pneg %p1339
      $region90: #{attention4d_forward.5} parent=5 // pred_check_branch
        %1342 = sbr.rel (%p1340) target = $region92
      $region91: #{attention4d_forward.5} parent=5 // pred_region
        %s1343 = ssub.s32 %s24, 2
        // Predicated region
        $region93: #{attention4d_forward.5} parent=91 // pred_check
          %p1344 = pneg %p320
        $region94: #{attention4d_forward.5} parent=91 // pred_check_branch
          %1346 = sbr.rel (%p1344) target = $region96
        $region95: #{attention4d_forward.5} parent=91 // pred_region
          %s1347 = sand.u32 %s305, 1
          %s1348 = scalar_lea.sflag [#allocation3], %s1347
          %s1349 = sand.u32 %s305, 1
          %s1350 = smul.addr %s1349, 16
          %s1351 = scalar_lea.vmem [#allocation10], %s1350
          %1353 = dma.done %s1348, 256
        $region96: #{attention4d_forward.5} parent=91 // pred_fallthru
          _
      $region92: #{attention4d_forward.5} parent=5 // pred_fallthru
        _
    $region6: #{attention4d_forward.5} parent=1 // loop_footer
      %s28 = sadd.s32 1, %s24
    $region7: #{attention4d_forward.5} parent=1 // loop_footer_branch
      %23 = sbr.rel target = $region3
    $region8: #{attention4d_forward.5} parent=1 // loop_exit
      _
    %1354 = vsyncpa [#allocation3], 1
    %s1355 = scalar_lea.sflag [#allocation3], 1
    %1356 = vsyncpa %s1355, 1
    %1357 = vsyncpa [#allocation4], 1
    %s1358 = scalar_lea.sflag [#allocation4], 1
    %1359 = vsyncpa %s1358, 1
    %1360 = vsyncpa [#allocation6], 1
    %1361 = vsyncpa [#allocation9], 1

</llo_original>
